<compile_context>
chip_gen: v7x
topology: tpu7x:2x2x1
jax: 0.10.0
libtpu: 0.0.40
codegen_flags: <defaults>
</compile_context>

<pallas_src>
import jax
import jax.numpy as jnp
import numpy as np
from jax.experimental import pallas as pl
from jax.experimental.pallas import tpu as pltpu

# ----------------------------- config ---------------------------------------
BATCH = 2
SEQ = 8
MODEL = 32
NUM_HEADS = 4
FF = 64
LN_EPS = 1e-5
NEG_INF = -1e9
# TODO(synk): nn.Dropout has no deterministic Pallas equivalent at train time;
# implemented as identity (eval mode), matching model.eval() semantics.


def _layernorm(x, gamma, beta, eps=LN_EPS):
    mu = jnp.mean(x, axis=-1, keepdims=True)
    var = jnp.mean((x - mu) ** 2, axis=-1, keepdims=True)
    return (x - mu) * jax.lax.rsqrt(var + eps) * gamma + beta


# ----------------------------- kernel ----------------------------------------
def encoder_kernel(x_ref, mask_ref, wqkv_ref, wo_ref, w1_ref, w2_ref, vec_ref,
                   out_ref):
    # One grid step == one batch element; everything (~25 KiB) lives in VMEM.
    S = x_ref.shape[1]
    D = x_ref.shape[2]
    FF_DIM = w2_ref.shape[0]
    d_head = D // NUM_HEADS
    scale = 1.0 / (d_head ** 0.5)

    x = x_ref[0]                                  # [S, D]

    # ---- additive attention bias built in-kernel (VPU filler work) ----
    mask_row = mask_ref[0]                        # [1, S]
    bias = jnp.where(mask_row > 0.0, 0.0, NEG_INF)  # [1, S] -> broadcast over q

    # ---- whole-array weight views (lane-aligned, no relayout) ----
    wqkv = wqkv_ref[...]                          # [D, 3D]
    wo = wo_ref[...]                              # [D, D]
    w1 = w1_ref[...]                              # [D, FF]
    w2 = w2_ref[...]                              # [FF, D]

    bqkv = vec_ref[0:1, 0:3 * D]                  # [1, 3D]
    bo = vec_ref[1:2, 0:D]
    g1 = vec_ref[2:3, 0:D]
    be1 = vec_ref[3:4, 0:D]
    b1 = vec_ref[4:5, 0:FF_DIM]
    b2 = vec_ref[5:6, 0:D]
    g2 = vec_ref[6:7, 0:D]
    be2 = vec_ref[7:8, 0:D]

    # ---- fused QKV projection (one [S,D] @ [D,3D] MXU push) ----
    qkv = jnp.dot(x, wqkv, preferred_element_type=jnp.float32) + bqkv   # [S, 3D]
    q = qkv[:, 0:D] * scale          # fold 1/sqrt(d_head) into q once
    k = qkv[:, D:2 * D]
    v = qkv[:, 2 * D:3 * D]

    # ---- per-head attention; contexts lane-concatenated for one Wo matmul ----
    ctx_heads = []
    for h in range(NUM_HEADS):
        lo, hi = h * d_head, (h + 1) * d_head
        qh = q[:, lo:hi]             # [S, dh]
        kh = k[:, lo:hi]
        vh = v[:, lo:hi]
        s = jax.lax.dot_general(qh, kh, (((1,), (1,)), ((), ())),
                                preferred_element_type=jnp.float32)     # [S, S]
        s = s + bias
        s = s - jnp.max(s, axis=-1, keepdims=True)
        p = jnp.exp(s)
        p = p / jnp.sum(p, axis=-1, keepdims=True)    # exact divide (precision)
        ctx_heads.append(jnp.dot(p, vh, preferred_element_type=jnp.float32))
    ctx = jnp.concatenate(ctx_heads, axis=-1)         # [S, D] (one lane tile)
    attn = jnp.dot(ctx, wo, preferred_element_type=jnp.float32) + bo    # [S, D]

    # ---- residual + layernorm 1 (dropout == identity) ----
    x1 = _layernorm(x + attn, g1, be1)

    # ---- feed-forward network ----
    h1 = jnp.dot(x1, w1, preferred_element_type=jnp.float32) + b1
    h1 = jnp.maximum(h1, 0.0)
    ff = jnp.dot(h1, w2, preferred_element_type=jnp.float32) + b2

    # ---- residual + layernorm 2 ----
    out_ref[0] = _layernorm(x1 + ff, g2, be2)


# ----------------------------- param packing (one-time, outside jit) ---------
def pack_params(params):
    D = params["wq"].shape[0]
    FF_DIM = params["w1"].shape[1]
    vec_w = max(3 * D, FF_DIM)

    def pad(vec):
        return jnp.pad(vec, (0, vec_w - vec.shape[0]))

    wqkv = jnp.concatenate([params["wq"], params["wk"], params["wv"]], axis=1)
    vecs = jnp.stack([
        pad(jnp.concatenate([params["bq"], params["bk"], params["bv"]])),
        pad(params["bo"]),
        pad(params["ln1_g"]), pad(params["ln1_b"]),
        pad(params["b1"]), pad(params["b2"]),
        pad(params["ln2_g"]), pad(params["ln2_b"]),
    ])
    return {"wqkv": wqkv, "wo": params["wo"], "w1": params["w1"],
            "w2": params["w2"], "vecs": vecs}


# ----------------------------- wrapper ----------------------------------------
@jax.jit
def encoder_forward(x, mask, packed):
    B, S, D = x.shape
    FF_DIM = packed["w2"].shape[0]
    mask3 = mask.reshape(B, 1, S)

    out = pl.pallas_call(
        encoder_kernel,
        out_shape=jax.ShapeDtypeStruct((B, S, D), jnp.float32),
        grid=(B,),
        in_specs=[
            pl.BlockSpec((1, S, D), lambda b: (b, 0, 0)),        # x (per batch)
            pl.BlockSpec((1, 1, S), lambda b: (b, 0, 0)),        # mask (per batch)
            pl.BlockSpec((D, 3 * D), lambda b: (0, 0)),          # wqkv (resident)
            pl.BlockSpec((D, D), lambda b: (0, 0)),              # wo
            pl.BlockSpec((D, FF_DIM), lambda b: (0, 0)),         # w1
            pl.BlockSpec((FF_DIM, D), lambda b: (0, 0)),         # w2
            pl.BlockSpec(packed["vecs"].shape, lambda b: (0, 0)),  # bias/LN slab
        ],
        out_specs=pl.BlockSpec((1, S, D), lambda b: (b, 0, 0)),
        compiler_params=pltpu.CompilerParams(
            dimension_semantics=("parallel",)),
    )(x, mask3, packed["wqkv"], packed["wo"], packed["w1"], packed["w2"],
      packed["vecs"])
    return out


# ----------------------------- reference (pure JAX) ---------------------------
def encoder_reference(x, mask, params):
    B, S, D = x.shape
    d_head = D // NUM_HEADS
    q = x @ params["wq"] + params["bq"]
    k = x @ params["wk"] + params["bk"]
    v = x @ params["wv"] + params["bv"]
    q = q.reshape(B, S, NUM_HEADS, d_head).transpose(0, 2, 1, 3)
    k = k.reshape(B, S, NUM_HEADS, d_head).transpose(0, 2, 1, 3)
    v = v.reshape(B, S, NUM_HEADS, d_head).transpose(0, 2, 1, 3)
    s = jnp.einsum("bhqd,bhkd->bhqk", q, k) / (d_head ** 0.5)
    s = jnp.where(mask[:, None, None, :] == 0.0, NEG_INF, s)
    p = jax.nn.softmax(s, axis=-1)
    o = jnp.einsum("bhqk,bhkd->bhqd", p, v).transpose(0, 2, 1, 3).reshape(B, S, D)
    attn = o @ params["wo"] + params["bo"]
    x1 = _layernorm(x + attn, params["ln1_g"], params["ln1_b"])
    h1 = jnp.maximum(x1 @ params["w1"] + params["b1"], 0.0)
    ff = h1 @ params["w2"] + params["b2"]
    return _layernorm(x1 + ff, params["ln2_g"], params["ln2_b"])


# ----------------------------- main -------------------------------------------
def _init_params(key):
    ks = jax.random.split(key, 8)
    scale_d = 1.0 / np.sqrt(MODEL)
    scale_f = 1.0 / np.sqrt(FF)
    return {
        "wq": jax.random.normal(ks[0], (MODEL, MODEL), jnp.float32) * scale_d,
        "bq": jnp.zeros((MODEL,), jnp.float32),
        "wk": jax.random.normal(ks[1], (MODEL, MODEL), jnp.float32) * scale_d,
        "bk": jnp.zeros((MODEL,), jnp.float32),
        "wv": jax.random.normal(ks[2], (MODEL, MODEL), jnp.float32) * scale_d,
        "bv": jnp.zeros((MODEL,), jnp.float32),
        "wo": jax.random.normal(ks[3], (MODEL, MODEL), jnp.float32) * scale_d,
        "bo": jax.random.normal(ks[4], (MODEL,), jnp.float32) * 0.01,
        "ln1_g": jnp.ones((MODEL,), jnp.float32),
        "ln1_b": jnp.zeros((MODEL,), jnp.float32),
        "w1": jax.random.normal(ks[5], (MODEL, FF), jnp.float32) * scale_d,
        "b1": jax.random.normal(ks[6], (FF,), jnp.float32) * 0.01,
        "w2": jax.random.normal(ks[7], (FF, MODEL), jnp.float32) * scale_f,
        "b2": jnp.zeros((MODEL,), jnp.float32),
        "ln2_g": jnp.ones((MODEL,), jnp.float32),
        "ln2_b": jnp.zeros((MODEL,), jnp.float32),
    }


if __name__ == "__main__":
    key = jax.random.PRNGKey(0)
    kx, kp = jax.random.split(key)
    x = jax.random.normal(kx, (BATCH, SEQ, MODEL), jnp.float32)
    # mask: 1 = attend, 0 = masked; mask out the last key position of batch 1.
    mask = jnp.ones((BATCH, SEQ), jnp.float32).at[1, -1].set(0.0)
    params = _init_params(kp)

    # One-time packing (not inside the jitted per-call wrapper).
    packed = jax.tree_util.tree_map(jax.block_until_ready, pack_params(params))

    out = encoder_forward(x, mask, packed)
    out = jax.block_until_ready(out)

    ref = encoder_reference(x, mask, params)
    np.testing.assert_allclose(np.asarray(out), np.asarray(ref),
                               rtol=1e-4, atol=1e-4)
    print("KERNEL_OK")
</pallas_src>

<mosaic_0001>
module attributes {stable_mosaic.version = 11 : i64} {
  func.func @encoder_kernel(%arg0: i32, %arg1: memref<1x8x32xf32, #tpu.memory_space<vmem>>, %arg2: memref<1x1x8xf32, #tpu.memory_space<vmem>>, %arg3: memref<32x96xf32, #tpu.memory_space<vmem>>, %arg4: memref<32x32xf32, #tpu.memory_space<vmem>>, %arg5: memref<32x64xf32, #tpu.memory_space<vmem>>, %arg6: memref<64x32xf32, #tpu.memory_space<vmem>>, %arg7: memref<8x96xf32, #tpu.memory_space<vmem>>, %arg8: memref<1x8x32xf32, #tpu.memory_space<vmem>>) attributes {dimension_semantics = [#tpu.dimension_semantics<parallel>], iteration_bounds = array<i64: 2>, scalar_prefetch = 0 : i64, scratch_operands = 0 : i64, tpu.core_type = #tpu.core_type<tc>, window_params = [{transform_indices = @transform_0, window_bounds = array<i64: 1, 8, 32>}, {transform_indices = @transform_1, window_bounds = array<i64: 1, 1, 8>}, {pipeline_mode = #tpu.pipeline_mode<synchronous>, transform_indices = @transform_2, window_bounds = array<i64: 32, 96>}, {pipeline_mode = #tpu.pipeline_mode<synchronous>, transform_indices = @transform_3, window_bounds = array<i64: 32, 32>}, {pipeline_mode = #tpu.pipeline_mode<synchronous>, transform_indices = @transform_4, window_bounds = array<i64: 32, 64>}, {pipeline_mode = #tpu.pipeline_mode<synchronous>, transform_indices = @transform_5, window_bounds = array<i64: 64, 32>}, {pipeline_mode = #tpu.pipeline_mode<synchronous>, transform_indices = @transform_6, window_bounds = array<i64: 8, 96>}, {transform_indices = @transform_7, window_bounds = array<i64: 1, 8, 32>}]} {
    %c0 = arith.constant 0 : index
    %c0_0 = arith.constant 0 : index
    %c0_1 = arith.constant 0 : index
    %0 = vector.load %arg1[%c0, %c0_0, %c0_1] : memref<1x8x32xf32, #tpu.memory_space<vmem>>, vector<1x8x32xf32>
    %1 = vector.shape_cast %0 : vector<1x8x32xf32> to vector<8x32xf32>
    %c0_2 = arith.constant 0 : index
    %c0_3 = arith.constant 0 : index
    %c0_4 = arith.constant 0 : index
    %2 = vector.load %arg2[%c0_2, %c0_3, %c0_4] : memref<1x1x8xf32, #tpu.memory_space<vmem>>, vector<1x1x8xf32>
    %3 = vector.shape_cast %2 : vector<1x1x8xf32> to vector<1x8xf32>
    %cst = arith.constant 0.000000e+00 : f32
    %4 = vector.broadcast %cst : f32 to vector<1x8xf32>
    %5 = arith.cmpf ogt, %3, %4 : vector<1x8xf32>
    %cst_5 = arith.constant 0.000000e+00 : f32
    %cst_6 = arith.constant -1.000000e+09 : f32
    %6 = vector.broadcast %cst_5 : f32 to vector<1x8xf32>
    %7 = vector.broadcast %cst_6 : f32 to vector<1x8xf32>
    %8 = arith.select %5, %6, %7 : vector<1x8xi1>, vector<1x8xf32>
    %c0_7 = arith.constant 0 : index
    %c0_8 = arith.constant 0 : index
    %9 = vector.load %arg3[%c0_7, %c0_8] : memref<32x96xf32, #tpu.memory_space<vmem>>, vector<32x96xf32>
    %c0_9 = arith.constant 0 : index
    %c0_10 = arith.constant 0 : index
    %10 = vector.load %arg4[%c0_9, %c0_10] : memref<32x32xf32, #tpu.memory_space<vmem>>, vector<32x32xf32>
    %c0_11 = arith.constant 0 : index
    %c0_12 = arith.constant 0 : index
    %11 = vector.load %arg5[%c0_11, %c0_12] : memref<32x64xf32, #tpu.memory_space<vmem>>, vector<32x64xf32>
    %c0_13 = arith.constant 0 : index
    %c0_14 = arith.constant 0 : index
    %12 = vector.load %arg6[%c0_13, %c0_14] : memref<64x32xf32, #tpu.memory_space<vmem>>, vector<64x32xf32>
    %c0_15 = arith.constant 0 : index
    %c0_16 = arith.constant 0 : index
    %13 = vector.load %arg7[%c0_15, %c0_16] : memref<8x96xf32, #tpu.memory_space<vmem>>, vector<1x96xf32>
    %c1 = arith.constant 1 : index
    %c0_17 = arith.constant 0 : index
    %14 = vector.load %arg7[%c1, %c0_17] : memref<8x96xf32, #tpu.memory_space<vmem>>, vector<1x32xf32>
    %c2 = arith.constant 2 : index
    %c0_18 = arith.constant 0 : index
    %15 = vector.load %arg7[%c2, %c0_18] : memref<8x96xf32, #tpu.memory_space<vmem>>, vector<1x32xf32>
    %c3 = arith.constant 3 : index
    %c0_19 = arith.constant 0 : index
    %16 = vector.load %arg7[%c3, %c0_19] : memref<8x96xf32, #tpu.memory_space<vmem>>, vector<1x32xf32>
    %c4 = arith.constant 4 : index
    %c0_20 = arith.constant 0 : index
    %17 = vector.load %arg7[%c4, %c0_20] : memref<8x96xf32, #tpu.memory_space<vmem>>, vector<1x64xf32>
    %c5 = arith.constant 5 : index
    %c0_21 = arith.constant 0 : index
    %18 = vector.load %arg7[%c5, %c0_21] : memref<8x96xf32, #tpu.memory_space<vmem>>, vector<1x32xf32>
    %c6 = arith.constant 6 : index
    %c0_22 = arith.constant 0 : index
    %19 = vector.load %arg7[%c6, %c0_22] : memref<8x96xf32, #tpu.memory_space<vmem>>, vector<1x32xf32>
    %c7 = arith.constant 7 : index
    %c0_23 = arith.constant 0 : index
    %20 = vector.load %arg7[%c7, %c0_23] : memref<8x96xf32, #tpu.memory_space<vmem>>, vector<1x32xf32>
    %cst_24 = arith.constant dense<0.000000e+00> : vector<8x96xf32>
    %21 = tpu.matmul %1, %9, %cst_24 {dimension_numbers = #tpu.dot_dimension_numbers<[1], [0], [0], [1], [0, 0, 1, 1], [], []>} : vector<8x32xf32>, vector<32x96xf32>, vector<8x96xf32> -> vector<8x96xf32>
    %22 = vector.broadcast %13 : vector<1x96xf32> to vector<8x96xf32>
    %23 = arith.addf %21, %22 : vector<8x96xf32>
    %24 = vector.extract_strided_slice %23 {offsets = [0, 0], sizes = [8, 32], strides = [1, 1]} : vector<8x96xf32> to vector<8x32xf32>
    %cst_25 = arith.constant 0.353553385 : f32
    %25 = vector.broadcast %cst_25 : f32 to vector<8x32xf32>
    %26 = arith.mulf %24, %25 : vector<8x32xf32>
    %27 = vector.extract_strided_slice %23 {offsets = [0, 32], sizes = [8, 32], strides = [1, 1]} : vector<8x96xf32> to vector<8x32xf32>
    %28 = vector.extract_strided_slice %23 {offsets = [0, 64], sizes = [8, 32], strides = [1, 1]} : vector<8x96xf32> to vector<8x32xf32>
    %29 = vector.extract_strided_slice %26 {offsets = [0, 0], sizes = [8, 8], strides = [1, 1]} : vector<8x32xf32> to vector<8x8xf32>
    %30 = vector.extract_strided_slice %27 {offsets = [0, 0], sizes = [8, 8], strides = [1, 1]} : vector<8x32xf32> to vector<8x8xf32>
    %31 = vector.extract_strided_slice %28 {offsets = [0, 0], sizes = [8, 8], strides = [1, 1]} : vector<8x32xf32> to vector<8x8xf32>
    %cst_26 = arith.constant dense<0.000000e+00> : vector<8x8xf32>
    %32 = tpu.matmul %29, %30, %cst_26 {dimension_numbers = #tpu.dot_dimension_numbers<[1], [1], [0], [0], [0, 0, 1, 0], [], []>} : vector<8x8xf32>, vector<8x8xf32>, vector<8x8xf32> -> vector<8x8xf32>
    %33 = vector.broadcast %8 : vector<1x8xf32> to vector<8x8xf32>
    %34 = arith.addf %32, %33 : vector<8x8xf32>
    %cst_27 = arith.constant dense<0xFF800000> : vector<8xf32>
    %35 = vector.multi_reduction <maximumf>, %34, %cst_27 [1] : vector<8x8xf32> to vector<8xf32>
    %36 = vector.shape_cast %35 : vector<8xf32> to vector<8x1xf32>
    %37 = vector.broadcast %36 : vector<8x1xf32> to vector<8x8xf32>
    %38 = arith.subf %34, %37 : vector<8x8xf32>
    %39 = math.exp %38 : vector<8x8xf32>
    %cst_28 = arith.constant dense<0.000000e+00> : vector<8xf32>
    %40 = vector.multi_reduction <add>, %39, %cst_28 [1] : vector<8x8xf32> to vector<8xf32>
    %41 = vector.shape_cast %40 : vector<8xf32> to vector<8x1xf32>
    %42 = vector.broadcast %41 : vector<8x1xf32> to vector<8x8xf32>
    %43 = arith.divf %39, %42 : vector<8x8xf32>
    %cst_29 = arith.constant dense<0.000000e+00> : vector<8x8xf32>
    %44 = tpu.matmul %43, %31, %cst_29 {dimension_numbers = #tpu.dot_dimension_numbers<[1], [0], [0], [1], [0, 0, 1, 1], [], []>} : vector<8x8xf32>, vector<8x8xf32>, vector<8x8xf32> -> vector<8x8xf32>
    %45 = vector.extract_strided_slice %26 {offsets = [0, 8], sizes = [8, 8], strides = [1, 1]} : vector<8x32xf32> to vector<8x8xf32>
    %46 = vector.extract_strided_slice %27 {offsets = [0, 8], sizes = [8, 8], strides = [1, 1]} : vector<8x32xf32> to vector<8x8xf32>
    %47 = vector.extract_strided_slice %28 {offsets = [0, 8], sizes = [8, 8], strides = [1, 1]} : vector<8x32xf32> to vector<8x8xf32>
    %cst_30 = arith.constant dense<0.000000e+00> : vector<8x8xf32>
    %48 = tpu.matmul %45, %46, %cst_30 {dimension_numbers = #tpu.dot_dimension_numbers<[1], [1], [0], [0], [0, 0, 1, 0], [], []>} : vector<8x8xf32>, vector<8x8xf32>, vector<8x8xf32> -> vector<8x8xf32>
    %49 = vector.broadcast %8 : vector<1x8xf32> to vector<8x8xf32>
    %50 = arith.addf %48, %49 : vector<8x8xf32>
    %cst_31 = arith.constant dense<0xFF800000> : vector<8xf32>
    %51 = vector.multi_reduction <maximumf>, %50, %cst_31 [1] : vector<8x8xf32> to vector<8xf32>
    %52 = vector.shape_cast %51 : vector<8xf32> to vector<8x1xf32>
    %53 = vector.broadcast %52 : vector<8x1xf32> to vector<8x8xf32>
    %54 = arith.subf %50, %53 : vector<8x8xf32>
    %55 = math.exp %54 : vector<8x8xf32>
    %cst_32 = arith.constant dense<0.000000e+00> : vector<8xf32>
    %56 = vector.multi_reduction <add>, %55, %cst_32 [1] : vector<8x8xf32> to vector<8xf32>
    %57 = vector.shape_cast %56 : vector<8xf32> to vector<8x1xf32>
    %58 = vector.broadcast %57 : vector<8x1xf32> to vector<8x8xf32>
    %59 = arith.divf %55, %58 : vector<8x8xf32>
    %cst_33 = arith.constant dense<0.000000e+00> : vector<8x8xf32>
    %60 = tpu.matmul %59, %47, %cst_33 {dimension_numbers = #tpu.dot_dimension_numbers<[1], [0], [0], [1], [0, 0, 1, 1], [], []>} : vector<8x8xf32>, vector<8x8xf32>, vector<8x8xf32> -> vector<8x8xf32>
    %61 = vector.extract_strided_slice %26 {offsets = [0, 16], sizes = [8, 8], strides = [1, 1]} : vector<8x32xf32> to vector<8x8xf32>
    %62 = vector.extract_strided_slice %27 {offsets = [0, 16], sizes = [8, 8], strides = [1, 1]} : vector<8x32xf32> to vector<8x8xf32>
    %63 = vector.extract_strided_slice %28 {offsets = [0, 16], sizes = [8, 8], strides = [1, 1]} : vector<8x32xf32> to vector<8x8xf32>
    %cst_34 = arith.constant dense<0.000000e+00> : vector<8x8xf32>
    %64 = tpu.matmul %61, %62, %cst_34 {dimension_numbers = #tpu.dot_dimension_numbers<[1], [1], [0], [0], [0, 0, 1, 0], [], []>} : vector<8x8xf32>, vector<8x8xf32>, vector<8x8xf32> -> vector<8x8xf32>
    %65 = vector.broadcast %8 : vector<1x8xf32> to vector<8x8xf32>
    %66 = arith.addf %64, %65 : vector<8x8xf32>
    %cst_35 = arith.constant dense<0xFF800000> : vector<8xf32>
    %67 = vector.multi_reduction <maximumf>, %66, %cst_35 [1] : vector<8x8xf32> to vector<8xf32>
    %68 = vector.shape_cast %67 : vector<8xf32> to vector<8x1xf32>
    %69 = vector.broadcast %68 : vector<8x1xf32> to vector<8x8xf32>
    %70 = arith.subf %66, %69 : vector<8x8xf32>
    %71 = math.exp %70 : vector<8x8xf32>
    %cst_36 = arith.constant dense<0.000000e+00> : vector<8xf32>
    %72 = vector.multi_reduction <add>, %71, %cst_36 [1] : vector<8x8xf32> to vector<8xf32>
    %73 = vector.shape_cast %72 : vector<8xf32> to vector<8x1xf32>
    %74 = vector.broadcast %73 : vector<8x1xf32> to vector<8x8xf32>
    %75 = arith.divf %71, %74 : vector<8x8xf32>
    %cst_37 = arith.constant dense<0.000000e+00> : vector<8x8xf32>
    %76 = tpu.matmul %75, %63, %cst_37 {dimension_numbers = #tpu.dot_dimension_numbers<[1], [0], [0], [1], [0, 0, 1, 1], [], []>} : vector<8x8xf32>, vector<8x8xf32>, vector<8x8xf32> -> vector<8x8xf32>
    %77 = vector.extract_strided_slice %26 {offsets = [0, 24], sizes = [8, 8], strides = [1, 1]} : vector<8x32xf32> to vector<8x8xf32>
    %78 = vector.extract_strided_slice %27 {offsets = [0, 24], sizes = [8, 8], strides = [1, 1]} : vector<8x32xf32> to vector<8x8xf32>
    %79 = vector.extract_strided_slice %28 {offsets = [0, 24], sizes = [8, 8], strides = [1, 1]} : vector<8x32xf32> to vector<8x8xf32>
    %cst_38 = arith.constant dense<0.000000e+00> : vector<8x8xf32>
    %80 = tpu.matmul %77, %78, %cst_38 {dimension_numbers = #tpu.dot_dimension_numbers<[1], [1], [0], [0], [0, 0, 1, 0], [], []>} : vector<8x8xf32>, vector<8x8xf32>, vector<8x8xf32> -> vector<8x8xf32>
    %81 = vector.broadcast %8 : vector<1x8xf32> to vector<8x8xf32>
    %82 = arith.addf %80, %81 : vector<8x8xf32>
    %cst_39 = arith.constant dense<0xFF800000> : vector<8xf32>
    %83 = vector.multi_reduction <maximumf>, %82, %cst_39 [1] : vector<8x8xf32> to vector<8xf32>
    %84 = vector.shape_cast %83 : vector<8xf32> to vector<8x1xf32>
    %85 = vector.broadcast %84 : vector<8x1xf32> to vector<8x8xf32>
    %86 = arith.subf %82, %85 : vector<8x8xf32>
    %87 = math.exp %86 : vector<8x8xf32>
    %cst_40 = arith.constant dense<0.000000e+00> : vector<8xf32>
    %88 = vector.multi_reduction <add>, %87, %cst_40 [1] : vector<8x8xf32> to vector<8xf32>
    %89 = vector.shape_cast %88 : vector<8xf32> to vector<8x1xf32>
    %90 = vector.broadcast %89 : vector<8x1xf32> to vector<8x8xf32>
    %91 = arith.divf %87, %90 : vector<8x8xf32>
    %cst_41 = arith.constant dense<0.000000e+00> : vector<8x8xf32>
    %92 = tpu.matmul %91, %79, %cst_41 {dimension_numbers = #tpu.dot_dimension_numbers<[1], [0], [0], [1], [0, 0, 1, 1], [], []>} : vector<8x8xf32>, vector<8x8xf32>, vector<8x8xf32> -> vector<8x8xf32>
    %93 = tpu.concatenate %44, %60, %76, %92 in 1 : vector<8x8xf32>, vector<8x8xf32>, vector<8x8xf32>, vector<8x8xf32> -> vector<8x32xf32>
    %cst_42 = arith.constant dense<0.000000e+00> : vector<8x32xf32>
    %94 = tpu.matmul %93, %10, %cst_42 {dimension_numbers = #tpu.dot_dimension_numbers<[1], [0], [0], [1], [0, 0, 1, 1], [], []>} : vector<8x32xf32>, vector<32x32xf32>, vector<8x32xf32> -> vector<8x32xf32>
    %95 = vector.broadcast %14 : vector<1x32xf32> to vector<8x32xf32>
    %96 = arith.addf %94, %95 : vector<8x32xf32>
    %97 = arith.addf %1, %96 : vector<8x32xf32>
    %cst_43 = arith.constant dense<0.000000e+00> : vector<8xf32>
    %98 = vector.multi_reduction <add>, %97, %cst_43 [1] : vector<8x32xf32> to vector<8xf32>
    %99 = vector.shape_cast %98 : vector<8xf32> to vector<8x1xf32>
    %cst_44 = arith.constant 3.200000e+01 : f32
    %100 = vector.broadcast %cst_44 : f32 to vector<8x1xf32>
    %101 = arith.divf %99, %100 : vector<8x1xf32>
    %102 = vector.broadcast %101 : vector<8x1xf32> to vector<8x32xf32>
    %103 = arith.subf %97, %102 : vector<8x32xf32>
    %104 = arith.mulf %103, %103 : vector<8x32xf32>
    %cst_45 = arith.constant dense<0.000000e+00> : vector<8xf32>
    %105 = vector.multi_reduction <add>, %104, %cst_45 [1] : vector<8x32xf32> to vector<8xf32>
    %106 = vector.shape_cast %105 : vector<8xf32> to vector<8x1xf32>
    %cst_46 = arith.constant 3.200000e+01 : f32
    %107 = vector.broadcast %cst_46 : f32 to vector<8x1xf32>
    %108 = arith.divf %106, %107 : vector<8x1xf32>
    %109 = vector.broadcast %101 : vector<8x1xf32> to vector<8x32xf32>
    %110 = arith.subf %97, %109 : vector<8x32xf32>
    %cst_47 = arith.constant 9.99999974E-6 : f32
    %111 = vector.broadcast %cst_47 : f32 to vector<8x1xf32>
    %112 = arith.addf %108, %111 : vector<8x1xf32>
    %113 = math.rsqrt %112 : vector<8x1xf32>
    %114 = vector.broadcast %113 : vector<8x1xf32> to vector<8x32xf32>
    %115 = arith.mulf %110, %114 : vector<8x32xf32>
    %116 = vector.broadcast %15 : vector<1x32xf32> to vector<8x32xf32>
    %117 = arith.mulf %115, %116 : vector<8x32xf32>
    %118 = vector.broadcast %16 : vector<1x32xf32> to vector<8x32xf32>
    %119 = arith.addf %117, %118 : vector<8x32xf32>
    %cst_48 = arith.constant dense<0.000000e+00> : vector<8x64xf32>
    %120 = tpu.matmul %119, %11, %cst_48 {dimension_numbers = #tpu.dot_dimension_numbers<[1], [0], [0], [1], [0, 0, 1, 1], [], []>} : vector<8x32xf32>, vector<32x64xf32>, vector<8x64xf32> -> vector<8x64xf32>
    %121 = vector.broadcast %17 : vector<1x64xf32> to vector<8x64xf32>
    %122 = arith.addf %120, %121 : vector<8x64xf32>
    %cst_49 = arith.constant 0.000000e+00 : f32
    %123 = vector.broadcast %cst_49 : f32 to vector<8x64xf32>
    %124 = arith.maximumf %122, %123 : vector<8x64xf32>
    %cst_50 = arith.constant dense<0.000000e+00> : vector<8x32xf32>
    %125 = tpu.matmul %124, %12, %cst_50 {dimension_numbers = #tpu.dot_dimension_numbers<[1], [0], [0], [1], [0, 0, 1, 1], [], []>} : vector<8x64xf32>, vector<64x32xf32>, vector<8x32xf32> -> vector<8x32xf32>
    %126 = vector.broadcast %18 : vector<1x32xf32> to vector<8x32xf32>
    %127 = arith.addf %125, %126 : vector<8x32xf32>
    %128 = arith.addf %119, %127 : vector<8x32xf32>
    %cst_51 = arith.constant dense<0.000000e+00> : vector<8xf32>
    %129 = vector.multi_reduction <add>, %128, %cst_51 [1] : vector<8x32xf32> to vector<8xf32>
    %130 = vector.shape_cast %129 : vector<8xf32> to vector<8x1xf32>
    %cst_52 = arith.constant 3.200000e+01 : f32
    %131 = vector.broadcast %cst_52 : f32 to vector<8x1xf32>
    %132 = arith.divf %130, %131 : vector<8x1xf32>
    %133 = vector.broadcast %132 : vector<8x1xf32> to vector<8x32xf32>
    %134 = arith.subf %128, %133 : vector<8x32xf32>
    %135 = arith.mulf %134, %134 : vector<8x32xf32>
    %cst_53 = arith.constant dense<0.000000e+00> : vector<8xf32>
    %136 = vector.multi_reduction <add>, %135, %cst_53 [1] : vector<8x32xf32> to vector<8xf32>
    %137 = vector.shape_cast %136 : vector<8xf32> to vector<8x1xf32>
    %cst_54 = arith.constant 3.200000e+01 : f32
    %138 = vector.broadcast %cst_54 : f32 to vector<8x1xf32>
    %139 = arith.divf %137, %138 : vector<8x1xf32>
    %140 = vector.broadcast %132 : vector<8x1xf32> to vector<8x32xf32>
    %141 = arith.subf %128, %140 : vector<8x32xf32>
    %cst_55 = arith.constant 9.99999974E-6 : f32
    %142 = vector.broadcast %cst_55 : f32 to vector<8x1xf32>
    %143 = arith.addf %139, %142 : vector<8x1xf32>
    %144 = math.rsqrt %143 : vector<8x1xf32>
    %145 = vector.broadcast %144 : vector<8x1xf32> to vector<8x32xf32>
    %146 = arith.mulf %141, %145 : vector<8x32xf32>
    %147 = vector.broadcast %19 : vector<1x32xf32> to vector<8x32xf32>
    %148 = arith.mulf %146, %147 : vector<8x32xf32>
    %149 = vector.broadcast %20 : vector<1x32xf32> to vector<8x32xf32>
    %150 = arith.addf %148, %149 : vector<8x32xf32>
    %c0_56 = arith.constant 0 : index
    %c0_57 = arith.constant 0 : index
    %c0_58 = arith.constant 0 : index
    %151 = vector.load %arg8[%c0_56, %c0_57, %c0_58] : memref<1x8x32xf32, #tpu.memory_space<vmem>>, vector<1x8x32xf32>
    %152 = vector.shape_cast %151 : vector<1x8x32xf32> to vector<8x32xf32>
    %153 = vector.shape_cast %150 : vector<8x32xf32> to vector<1x8x32xf32>
    tpu.vector_store %arg8[%c0_56, %c0_57, %c0_58], %153 {strides = array<i32>} : memref<1x8x32xf32, #tpu.memory_space<vmem>>, vector<1x8x32xf32>,
    return
  }
  func.func @transform_0(%arg0: i32) -> (i32, i32, i32) {
    %c0_i32 = arith.constant 0 : i32
    %c0_i32_0 = arith.constant 0 : i32
    %c0_i32_1 = arith.constant 0 : i32
    return %arg0, %c0_i32, %c0_i32_0 : i32, i32, i32
  }
  func.func @transform_1(%arg0: i32) -> (i32, i32, i32) {
    %c0_i32 = arith.constant 0 : i32
    %c0_i32_0 = arith.constant 0 : i32
    %c0_i32_1 = arith.constant 0 : i32
    return %arg0, %c0_i32, %c0_i32_0 : i32, i32, i32
  }
  func.func @transform_2(%arg0: i32) -> (i32, i32) {
    %c0_i32 = arith.constant 0 : i32
    %c0_i32_0 = arith.constant 0 : i32
    %c0_i32_1 = arith.constant 0 : i32
    return %c0_i32, %c0_i32_0 : i32, i32
  }
  func.func @transform_3(%arg0: i32) -> (i32, i32) {
    %c0_i32 = arith.constant 0 : i32
    %c0_i32_0 = arith.constant 0 : i32
    %c0_i32_1 = arith.constant 0 : i32
    return %c0_i32, %c0_i32_0 : i32, i32
  }
  func.func @transform_4(%arg0: i32) -> (i32, i32) {
    %c0_i32 = arith.constant 0 : i32
    %c0_i32_0 = arith.constant 0 : i32
    %c0_i32_1 = arith.constant 0 : i32
    return %c0_i32, %c0_i32_0 : i32, i32
  }
  func.func @transform_5(%arg0: i32) -> (i32, i32) {
    %c0_i32 = arith.constant 0 : i32
    %c0_i32_0 = arith.constant 0 : i32
    %c0_i32_1 = arith.constant 0 : i32
    return %c0_i32, %c0_i32_0 : i32, i32
  }
  func.func @transform_6(%arg0: i32) -> (i32, i32) {
    %c0_i32 = arith.constant 0 : i32
    %c0_i32_0 = arith.constant 0 : i32
    %c0_i32_1 = arith.constant 0 : i32
    return %c0_i32, %c0_i32_0 : i32, i32
  }
  func.func @transform_7(%arg0: i32) -> (i32, i32, i32) {
    %c0_i32 = arith.constant 0 : i32
    %c0_i32_0 = arith.constant 0 : i32
    %c0_i32_1 = arith.constant 0 : i32
    return %arg0, %c0_i32, %c0_i32_0 : i32, i32, i32
  }
}

</mosaic_0001>

<llo_original>
// kernel: encoder_forward.1
$region0: #{encoder_forward.1}
  #allocation0 [shape = 'u32[]', space=smem, size = 0x4, offset = 0x4, fixed_abs, tag = 'smem constant byte address 0x4 - core index']
  #allocation1 [shape = 'u32[144,128]{1,0:T(1,128)}', space=vmem, size = 0x12000, scoped, tag = 'internal scratch']
  %s0 = inlined_call_operand.hbm [shape: f32[2,8,32], index: 0, kind: input, shape index: {}]
  %s1 = inlined_call_operand.vmem [shape: f32[2,1,8], index: 1, kind: input, shape index: {}]
  %s2 = inlined_call_operand.vmem [shape: f32[32,96], index: 2, kind: input, shape index: {}]
  %s3 = inlined_call_operand.vmem [shape: f32[32,32], index: 3, kind: input, shape index: {}]
  %s4 = inlined_call_operand.vmem [shape: f32[32,64], index: 4, kind: input, shape index: {}]
  %s5 = inlined_call_operand.vmem [shape: f32[64,32], index: 5, kind: input, shape index: {}]
  %s6 = inlined_call_operand.vmem [shape: f32[8,96], index: 6, kind: input, shape index: {}]
  %s7 = inlined_call_operand.hbm [shape: f32[2,8,32], index: 7, kind: output, shape index: {}]
  %s8 = sld [smem:[#allocation0]]
  $region65: #{encoder_forward.1} parent=0
    _
  %s10 = ssub.s32 1, %s8
  %s11 = scalar_select 0, %s10, %s8
  $region1: #{encoder_forward.1} parent=0
    #allocation2 [shape = 'u8[8192]{0}', space=vmem, size = 0x2000, scoped, tag = 'input window, operand 0']
    #allocation3 [shape = 's32[2]{0}', space=sflag, size = 0x8, scoped, tag = 'scoped memory for encoder_forward.1']
    #allocation4 [shape = 's32[2]{0}', space=sflag, size = 0x8, scoped, tag = 'scoped memory for encoder_forward.1']
    #allocation5 [shape = 'u8[8192]{0}', space=vmem, size = 0x2000, scoped, tag = 'output window, operand 0']
    %12 = vsyncpa [#allocation3], 0
    %s13 = scalar_lea.sflag [#allocation3], 1
    %14 = vsyncpa %s13, 0
    %15 = vsyncpa [#allocation4], 0
    %s16 = scalar_lea.sflag [#allocation4], 1
    %17 = vsyncpa %s16, 0
    loop: start=0, step=1, limit=4
    $region2: #{encoder_forward.1} parent=1 // loop_pre_header
      _
    $region3: #{encoder_forward.1} parent=1 // loop_header
      %s19 = sphi 0, %s23
      %p20 = scmp.ge.s32.totalorder %s19, 4
      %s29 = sphi 0, %s31
      %s32 = sphi 0, %s29
      %s33 = sphi 0, %s32
      %s49 = sphi 0, %s33
      %s55 = sphi 0, %s57
      %s58 = sphi 0, %s55
      %s59 = sphi 0, %s58
      %s75 = sphi 0, %s59
      %s79 = sphi 0, %s79
      %s81 = sphi 0, %s79
      %s82 = sphi 0, %s81
      %s96 = sphi 0, %s82
      %s100 = sphi 0, %s100
      %s102 = sphi 0, %s100
      %s103 = sphi 0, %s102
      %s117 = sphi 0, %s103
      %s121 = sphi 0, %s121
      %s123 = sphi 0, %s121
      %s124 = sphi 0, %s123
      %s138 = sphi 0, %s124
      %s142 = sphi 0, %s142
      %s144 = sphi 0, %s142
      %s145 = sphi 0, %s144
      %s159 = sphi 0, %s145
      %s163 = sphi 0, %s163
      %s165 = sphi 0, %s163
      %s166 = sphi 0, %s165
      %s180 = sphi 0, %s166
      %s186 = sphi 0, %s188
      %s189 = sphi 0, %s186
      %s190 = sphi 0, %s189
      %s206 = sphi 0, %s190
    $region4: #{encoder_forward.1} parent=1 // loop_header_branch
      %22 = sbr.rel (%p20) target = $region8
    $region5: #{encoder_forward.1} parent=1 // loop_body
      %s24 = ssub.s32 %s19, 1
      %s25 = ssub.s32 %s19, 2
      %s26 = sadd.s32 %s19, 1
      %s27 = ssub.s32 %s19, %s26
      %p28 = scmp.eq.s32.totalorder %s27, 0
      %s30 = sadd.s32 %s29, 1
      %s31 = scalar_select %p28, %s29, %s30
      %p34 = pneg %p28
      %p35 = scmp.eq.s32.totalorder %s19, 1
      %p36 = por %p34, %p35
      %p37 = scmp.ne.s32.totalorder %s29, %s32
      %p38 = scmp.eq.s32.totalorder %s19, 0
      %p39 = por %p37, %p38
      %p40 = scmp.ne.s32.totalorder %s29, %s32
      %p41 = scmp.eq.s32.totalorder %s24, 1
      %p42 = por %p40, %p41
      %p43 = scmp.ne.s32.totalorder %s32, %s33
      %p44 = scmp.eq.s32.totalorder %s24, 0
      %p45 = por %p43, %p44
      %p46 = scmp.ne.s32.totalorder %s32, %s33
      %p47 = scmp.eq.s32.totalorder %s25, 1
      %p48 = por %p46, %p47
      %p50 = scmp.ne.s32.totalorder %s33, %s49
      %p51 = scmp.eq.s32.totalorder %s25, 0
      %p52 = por %p50, %p51
      %s53 = ssub.s32 %s19, %s26
      %p54 = scmp.eq.s32.totalorder %s53, 0
      %s56 = sadd.s32 %s55, 1
      %s57 = scalar_select %p54, %s55, %s56
      %p60 = pneg %p54
      %p61 = scmp.eq.s32.totalorder %s19, 1
      %p62 = por %p60, %p61
      %p63 = scmp.ne.s32.totalorder %s55, %s58
      %p64 = scmp.eq.s32.totalorder %s19, 0
      %p65 = por %p63, %p64
      %p66 = scmp.ne.s32.totalorder %s55, %s58
      %p67 = scmp.eq.s32.totalorder %s24, 1
      %p68 = por %p66, %p67
      %p69 = scmp.ne.s32.totalorder %s58, %s59
      %p70 = scmp.eq.s32.totalorder %s24, 0
      %p71 = por %p69, %p70
      %p72 = scmp.ne.s32.totalorder %s58, %s59
      %p73 = scmp.eq.s32.totalorder %s25, 1
      %p74 = por %p72, %p73
      %p76 = scmp.ne.s32.totalorder %s59, %s75
      %p77 = scmp.eq.s32.totalorder %s25, 0
      %p78 = por %p76, %p77
      %s80 = sadd.s32 %s79, 1
      %p83 = scmp.eq.s32.totalorder %s19, 1
      %p84 = scmp.ne.s32.totalorder %s79, %s81
      %p85 = scmp.eq.s32.totalorder %s19, 0
      %p86 = por %p84, %p85
      %p87 = scmp.ne.s32.totalorder %s79, %s81
      %p88 = scmp.eq.s32.totalorder %s24, 1
      %p89 = por %p87, %p88
      %p90 = scmp.ne.s32.totalorder %s81, %s82
      %p91 = scmp.eq.s32.totalorder %s24, 0
      %p92 = por %p90, %p91
      %p93 = scmp.ne.s32.totalorder %s81, %s82
      %p94 = scmp.eq.s32.totalorder %s25, 1
      %p95 = por %p93, %p94
      %p97 = scmp.ne.s32.totalorder %s82, %s96
      %p98 = scmp.eq.s32.totalorder %s25, 0
      %p99 = por %p97, %p98
      %s101 = sadd.s32 %s100, 1
      %p104 = scmp.eq.s32.totalorder %s19, 1
      %p105 = scmp.ne.s32.totalorder %s100, %s102
      %p106 = scmp.eq.s32.totalorder %s19, 0
      %p107 = por %p105, %p106
      %p108 = scmp.ne.s32.totalorder %s100, %s102
      %p109 = scmp.eq.s32.totalorder %s24, 1
      %p110 = por %p108, %p109
      %p111 = scmp.ne.s32.totalorder %s102, %s103
      %p112 = scmp.eq.s32.totalorder %s24, 0
      %p113 = por %p111, %p112
      %p114 = scmp.ne.s32.totalorder %s102, %s103
      %p115 = scmp.eq.s32.totalorder %s25, 1
      %p116 = por %p114, %p115
      %p118 = scmp.ne.s32.totalorder %s103, %s117
      %p119 = scmp.eq.s32.totalorder %s25, 0
      %p120 = por %p118, %p119
      %s122 = sadd.s32 %s121, 1
      %p125 = scmp.eq.s32.totalorder %s19, 1
      %p126 = scmp.ne.s32.totalorder %s121, %s123
      %p127 = scmp.eq.s32.totalorder %s19, 0
      %p128 = por %p126, %p127
      %p129 = scmp.ne.s32.totalorder %s121, %s123
      %p130 = scmp.eq.s32.totalorder %s24, 1
      %p131 = por %p129, %p130
      %p132 = scmp.ne.s32.totalorder %s123, %s124
      %p133 = scmp.eq.s32.totalorder %s24, 0
      %p134 = por %p132, %p133
      %p135 = scmp.ne.s32.totalorder %s123, %s124
      %p136 = scmp.eq.s32.totalorder %s25, 1
      %p137 = por %p135, %p136
      %p139 = scmp.ne.s32.totalorder %s124, %s138
      %p140 = scmp.eq.s32.totalorder %s25, 0
      %p141 = por %p139, %p140
      %s143 = sadd.s32 %s142, 1
      %p146 = scmp.eq.s32.totalorder %s19, 1
      %p147 = scmp.ne.s32.totalorder %s142, %s144
      %p148 = scmp.eq.s32.totalorder %s19, 0
      %p149 = por %p147, %p148
      %p150 = scmp.ne.s32.totalorder %s142, %s144
      %p151 = scmp.eq.s32.totalorder %s24, 1
      %p152 = por %p150, %p151
      %p153 = scmp.ne.s32.totalorder %s144, %s145
      %p154 = scmp.eq.s32.totalorder %s24, 0
      %p155 = por %p153, %p154
      %p156 = scmp.ne.s32.totalorder %s144, %s145
      %p157 = scmp.eq.s32.totalorder %s25, 1
      %p158 = por %p156, %p157
      %p160 = scmp.ne.s32.totalorder %s145, %s159
      %p161 = scmp.eq.s32.totalorder %s25, 0
      %p162 = por %p160, %p161
      %s164 = sadd.s32 %s163, 1
      %p167 = scmp.eq.s32.totalorder %s19, 1
      %p168 = scmp.ne.s32.totalorder %s163, %s165
      %p169 = scmp.eq.s32.totalorder %s19, 0
      %p170 = por %p168, %p169
      %p171 = scmp.ne.s32.totalorder %s163, %s165
      %p172 = scmp.eq.s32.totalorder %s24, 1
      %p173 = por %p171, %p172
      %p174 = scmp.ne.s32.totalorder %s165, %s166
      %p175 = scmp.eq.s32.totalorder %s24, 0
      %p176 = por %p174, %p175
      %p177 = scmp.ne.s32.totalorder %s165, %s166
      %p178 = scmp.eq.s32.totalorder %s25, 1
      %p179 = por %p177, %p178
      %p181 = scmp.ne.s32.totalorder %s166, %s180
      %p182 = scmp.eq.s32.totalorder %s25, 0
      %p183 = por %p181, %p182
      %s184 = ssub.s32 %s19, %s26
      %p185 = scmp.eq.s32.totalorder %s184, 0
      %s187 = sadd.s32 %s186, 1
      %s188 = scalar_select %p185, %s186, %s187
      %p191 = pneg %p185
      %p192 = scmp.eq.s32.totalorder %s19, 1
      %p193 = por %p191, %p192
      %p194 = scmp.ne.s32.totalorder %s186, %s189
      %p195 = scmp.eq.s32.totalorder %s19, 0
      %p196 = por %p194, %p195
      %p197 = scmp.ne.s32.totalorder %s186, %s189
      %p198 = scmp.eq.s32.totalorder %s24, 1
      %p199 = por %p197, %p198
      %p200 = scmp.ne.s32.totalorder %s189, %s190
      %p201 = scmp.eq.s32.totalorder %s24, 0
      %p202 = por %p200, %p201
      %p203 = scmp.ne.s32.totalorder %s189, %s190
      %p204 = scmp.eq.s32.totalorder %s25, 1
      %p205 = por %p203, %p204
      %p207 = scmp.ne.s32.totalorder %s190, %s206
      %p208 = scmp.eq.s32.totalorder %s25, 0
      %p209 = por %p207, %p208
      %p210 = scmp.le.s32.totalorder 1, %s19
      %p211 = scmp.lt.s32.totalorder %s19, 3
      %p212 = pnand %p210, %p211
      %p213 = pneg %p212
      // Predicated region
      $region9: #{encoder_forward.1} parent=5 // pred_check
        _
      $region10: #{encoder_forward.1} parent=5 // pred_check_branch
        %215 = sbr.rel (%p212) target = $region12
      $region11: #{encoder_forward.1} parent=5 // pred_region
        %s216 = ssub.s32 %s19, 1
        // Predicated region
        $region13: #{encoder_forward.1} parent=11 // pred_check
          %p217 = pneg %p92
        $region14: #{encoder_forward.1} parent=11 // pred_check_branch
          %219 = sbr.rel (%p217) target = $region16
        $region15: #{encoder_forward.1} parent=11 // pred_region
          _
        $region16: #{encoder_forward.1} parent=11 // pred_fallthru
          _
        // Predicated region
        $region17: #{encoder_forward.1} parent=11 // pred_check
          %p220 = pneg %p113
        $region18: #{encoder_forward.1} parent=11 // pred_check_branch
          %222 = sbr.rel (%p220) target = $region20
        $region19: #{encoder_forward.1} parent=11 // pred_region
          _
        $region20: #{encoder_forward.1} parent=11 // pred_fallthru
          _
        // Predicated region
        $region21: #{encoder_forward.1} parent=11 // pred_check
          %p223 = pneg %p134
        $region22: #{encoder_forward.1} parent=11 // pred_check_branch
          %225 = sbr.rel (%p223) target = $region24
        $region23: #{encoder_forward.1} parent=11 // pred_region
          _
        $region24: #{encoder_forward.1} parent=11 // pred_fallthru
          _
        // Predicated region
        $region25: #{encoder_forward.1} parent=11 // pred_check
          %p226 = pneg %p155
        $region26: #{encoder_forward.1} parent=11 // pred_check_branch
          %228 = sbr.rel (%p226) target = $region28
        $region27: #{encoder_forward.1} parent=11 // pred_region
          _
        $region28: #{encoder_forward.1} parent=11 // pred_fallthru
          _
        // Predicated region
        $region29: #{encoder_forward.1} parent=11 // pred_check
          %p229 = pneg %p176
        $region30: #{encoder_forward.1} parent=11 // pred_check_branch
          %231 = sbr.rel (%p229) target = $region32
        $region31: #{encoder_forward.1} parent=11 // pred_region
          _
        $region32: #{encoder_forward.1} parent=11 // pred_fallthru
          _
      $region12: #{encoder_forward.1} parent=5 // pred_fallthru
        _
      %p232 = scmp.lt.s32.totalorder %s19, 2
      // Predicated region
      $region33: #{encoder_forward.1} parent=5 // pred_check
        %p233 = pneg %p232
      $region34: #{encoder_forward.1} parent=5 // pred_check_branch
        %235 = sbr.rel (%p233) target = $region36
      $region35: #{encoder_forward.1} parent=5 // pred_region
        // Predicated region
        $region37: #{encoder_forward.1} parent=35 // pred_check
          %p236 = pneg %p39
        $region38: #{encoder_forward.1} parent=35 // pred_check_branch
          %238 = sbr.rel (%p236) target = $region40
        $region39: #{encoder_forward.1} parent=35 // pred_region
          %s239 = sand.u32 %s29, 1
          %s240 = scalar_lea.sflag [#allocation3], %s239
          %s241 = sand.u32 %s29, 1
          %s242 = smul.addr %s241, 8
          %s243 = scalar_lea.vmem [#allocation2], %s242
          %s245 = ssub.s32 128, 128
          %246 = vsyncadd %s240, %s245
          %s247 = smul.addr %s19, 128
          %s248 = scalar_lea.hbm %s0, %s247
          %s250 = sshll.u32 %s243, 4
          %s251 = int_to_ptr.vmem [resolvable:$true] %s250
          %253 = dma.hbm_to_vmem [thread:$0]  %s248, 128, %s251, %s240
        $region40: #{encoder_forward.1} parent=35 // pred_fallthru
          _
        // Predicated region
        $region41: #{encoder_forward.1} parent=35 // pred_check
          %p254 = pneg %p65
        $region42: #{encoder_forward.1} parent=35 // pred_check_branch
          %256 = sbr.rel (%p254) target = $region44
        $region43: #{encoder_forward.1} parent=35 // pred_region
          %p257 = scmp.lt.s32.totalorder %s19, 1
          %s258 = scalar_select %p257, %s19, 1
          %s259 = scalar_lea.vmem %s1, %s258
        $region44: #{encoder_forward.1} parent=35 // pred_fallthru
          _
      $region36: #{encoder_forward.1} parent=5 // pred_fallthru
        _
      %p260 = scmp.le.s32.totalorder 1, %s19
      %p261 = scmp.lt.s32.totalorder %s19, 3
      %p262 = pnand %p260, %p261
      %p263 = pneg %p262
      // Predicated region
      $region45: #{encoder_forward.1} parent=5 // pred_check
        _
      $region46: #{encoder_forward.1} parent=5 // pred_check_branch
        %265 = sbr.rel (%p262) target = $region48
      $region47: #{encoder_forward.1} parent=5 // pred_region
        %s266 = ssub.s32 %s19, 1
        %s267 = sand.u32 %s32, 1
        %s268 = scalar_lea.sflag [#allocation3], %s267
        %s269 = sand.u32 %s32, 1
        %s270 = smul.addr %s269, 8
        %s271 = scalar_lea.vmem [#allocation2], %s270
        // Predicated region
        $region49: #{encoder_forward.1} parent=47 // pred_check
          %p272 = pneg %p45
        $region50: #{encoder_forward.1} parent=47 // pred_check_branch
          %274 = sbr.rel (%p272) target = $region52
        $region51: #{encoder_forward.1} parent=47 // pred_region
          %275 = dma.done %s268, 128
        $region52: #{encoder_forward.1} parent=47 // pred_fallthru
          _
        %s276 = sand.u32 %s32, 1
        %s277 = scalar_lea.sflag [#allocation3], %s276
        %s278 = sand.u32 %s32, 1
        %s279 = smul.addr %s278, 8
        %s280 = scalar_lea.vmem [#allocation2], %s279
        %p281 = pneg %p45
        %p282 = pneg %p42
        %p283 = scmp.lt.s32.totalorder %s24, 1
        %s284 = scalar_select %p283, %s24, 1
        %s285 = scalar_lea.vmem %s1, %s284
        %p286 = pneg %p71
        %p287 = pneg %p68
        %p288 = pneg %p92
        %p289 = pneg %p89
        %p290 = pneg %p113
        %p291 = pneg %p110
        %p292 = pneg %p134
        %p293 = pneg %p131
        %p294 = pneg %p155
        %p295 = pneg %p152
        %p296 = pneg %p176
        %p297 = pneg %p173
        %p298 = pneg %p202
        %p299 = pneg %p199
        %s300 = sand.u32 %s189, 1
        %s301 = scalar_lea.sflag [#allocation4], %s300
        %s302 = sand.u32 %s189, 1
        %s303 = smul.addr %s302, 8
        %s304 = scalar_lea.vmem [#allocation5], %s303
        %p305 = scmp.lt.s32.totalorder %s24, 1
        %s306 = scalar_select %p305, %s24, 1
        %s307 = scalar_lea.vmem %s1, %s306
        %v308 = vld [vmem:[%s271] sm:$0xff]
        %v309 = vld [vmem:[%s307] sm:$0x1]
        %vm310 = vcmp.gt.f32.partialorder %v309, 0.0
        %v311 = vsel %vm310, 0.0, -1e+09
        %v312 = vld [vmem:[%s2] sm:$0xff]
        %v313 = vld [vmem:[%s2 + $0x8] sm:$0xff]
        %v314 = vld [vmem:[%s2 + $0x10] sm:$0xff]
        %v315 = vld [vmem:[%s2 + $0x18] sm:$0xff]
        %v316 = vld [vmem:[%s3] sm:$0xff]
        %v317 = vld [vmem:[%s3 + $0x8] sm:$0xff]
        %v318 = vld [vmem:[%s3 + $0x10] sm:$0xff]
        %v319 = vld [vmem:[%s3 + $0x18] sm:$0xff]
        %v320 = vld [vmem:[%s4] sm:$0xff]
        %v321 = vld [vmem:[%s4 + $0x8] sm:$0xff]
        %v322 = vld [vmem:[%s4 + $0x10] sm:$0xff]
        %v323 = vld [vmem:[%s4 + $0x18] sm:$0xff]
        %v324 = vld [vmem:[%s5] sm:$0xff]
        %v325 = vld [vmem:[%s5 + $0x8] sm:$0xff]
        %v326 = vld [vmem:[%s5 + $0x10] sm:$0xff]
        %v327 = vld [vmem:[%s5 + $0x18] sm:$0xff]
        %v328 = vld [vmem:[%s5 + $0x20] sm:$0xff]
        %v329 = vld [vmem:[%s5 + $0x28] sm:$0xff]
        %v330 = vld [vmem:[%s5 + $0x30] sm:$0xff]
        %v331 = vld [vmem:[%s5 + $0x38] sm:$0xff]
        %v332 = vld [vmem:[%s6] sm:$0x1]
        %v333 = vld [vmem:[%s6 + $0x1] sm:$0x1]
        %v334 = vld [vmem:[%s6 + $0x2] sm:$0x1]
        %v335 = vld [vmem:[%s6 + $0x3] sm:$0x1]
        %v336 = vld [vmem:[%s6 + $0x4] sm:$0x1]
        %v337 = vld [vmem:[%s6 + $0x5] sm:$0x1]
        %v338 = vld [vmem:[%s6 + $0x6] sm:$0x1]
        %v339 = vld [vmem:[%s6 + $0x7] sm:$0x1]
        %v340 = vlaneseq
        %v341 = vshrl.u32 %v340, 7
        %v342 = vsub.s32 0, %v341
        %v343 = vrot.slane %v332, %v342
        %vm344 = vcmask 261120
        %v346 = vsel %vm344, %v308, 0
        %348 = vmatprep.subr.mxu0 0.0
        %349 = vmatpush1.msra.mxu0 %v312
        %350 = vmatprep.subr.mxu0 0.0
        %351 = vmatpush1.msra.mxu0 %v313
        %352 = vmatprep.subr.mxu0 0.0
        %353 = vmatpush1.msra.mxu0 %v314
        %354 = vmatprep.subr.mxu0 0.0
        %355 = vmatpush1.msra.mxu0 %v315
        %356 = vmatprep.subr.mxu0 0.0
        %357 = vmatpush1.msra.mxu0 0.0
        %358 = vmatprep.subr.mxu0 0.0
        %359 = vmatpush1.msra.mxu0 0.0
        %360 = vmatprep.subr.mxu0 0.0
        %361 = vmatpush1.msra.mxu0 0.0
        %362 = vmatprep.subr.mxu0 0.0
        %363 = vmatpush1.msra.mxu0 0.0
        %364 = vmatprep.subr.mxu0 0.0
        %365 = vmatpush1.msra.mxu0 0.0
        %366 = vmatprep.subr.mxu0 0.0
        %367 = vmatpush1.msra.mxu0 0.0
        %368 = vmatprep.subr.mxu0 0.0
        %369 = vmatpush1.msra.mxu0 0.0
        %370 = vmatprep.subr.mxu0 0.0
        %371 = vmatpush1.msra.mxu0 0.0
        %372 = vmatprep.subr.mxu0 0.0
        %373 = vmatpush1.msra.mxu0 0.0
        %374 = vmatprep.subr.mxu0 0.0
        %375 = vmatpush1.msra.mxu0 0.0
        %376 = vmatprep.subr.mxu0 0.0
        %377 = vmatpush1.msra.mxu0 0.0
        %378 = vmatprep.subr.mxu0 0.0
        %379 = vmatpush1.msra.mxu0 0.0
        %380 = vmatprep.subr.mxu0 0.0
        %381 = vmatpush1.msra.mxu0 0.0
        %382 = vmatprep.subr.mxu0 0.0
        %383 = vmatpush1.msra.mxu0 0.0
        %384 = vmatprep.subr.mxu0 0.0
        %385 = vmatpush1.msra.mxu0 0.0
        %386 = vmatprep.subr.mxu0 0.0
        %387 = vmatpush1.msra.mxu0 0.0
        %388 = vmatprep.subr.mxu0 0.0
        %389 = vmatpush1.msra.mxu0 0.0
        %390 = vmatprep.subr.mxu0 0.0
        %391 = vmatpush1.msra.mxu0 0.0
        %392 = vmatprep.subr.mxu0 0.0
        %393 = vmatpush1.msra.mxu0 0.0
        %394 = vmatprep.subr.mxu0 0.0
        %395 = vmatpush1.msra.mxu0 0.0
        %396 = vmatprep.subr.mxu0 0.0
        %397 = vmatpush1.msra.mxu0 0.0
        %398 = vmatprep.subr.mxu0 0.0
        %399 = vmatpush1.msra.mxu0 0.0
        %400 = vmatprep.subr.mxu0 0.0
        %401 = vmatpush1.msra.mxu0 0.0
        %402 = vmatprep.subr.mxu0 0.0
        %403 = vmatpush1.msra.mxu0 0.0
        %404 = vmatprep.subr.mxu0 0.0
        %405 = vmatpush1.msra.mxu0 0.0
        %406 = vmatprep.subr.mxu0 0.0
        %407 = vmatpush1.msra.mxu0 0.0
        %408 = vmatprep.subr.mxu0 0.0
        %409 = vmatpush1.msra.mxu0 0.0
        %410 = vmatprep.subr.mxu0 0.0
        %411 = vmatpush1.msra.mxu0 0.0
        %412 = vmatprep.mubr.f32.mxu0 0.0
        %413 = vmatmul.mubr.f32.gmra.mrb[0].mxu0 %v346
        %v414 = vpop.f32.mrb[0].mxu0
        %v415 = vadd.f32 %v343, %v414
        %v416 = vpop.f32.mrb[0].mxu0
        %417 = vdwg.mxu0
        %v418 = vmul.f32 %v415, 0.35355338
        %v420 = vlaneseq
        %v421 = vshrl.u32 %v420, 7
        %v422 = vsub.s32 0, %v421
        %v423 = vrot.slane %v311, %v422
        %426 = vrot.lane.b32.xlu0 %v415, 96
        %v427 = vpop.permute.xlu0 %426
        %vm428 = vcmask 64512
        %v430 = vsel %vm428, %v418, 0
        %v432 = vsel %vm428, %v427, 0
        %434 = vmatprep.subr.mxu0 0.0
        %435 = vmatpush1.xpose.msra.mxu0 %v432
        %436 = vmatprep.subr.mxu0 0.0
        %437 = vmatpush1.xpose.msra.mxu0 0.0
        %438 = vmatprep.subr.mxu0 0.0
        %439 = vmatpush1.xpose.msra.mxu0 0.0
        %440 = vmatprep.subr.mxu0 0.0
        %441 = vmatpush1.xpose.msra.mxu0 0.0
        %442 = vmatprep.subr.mxu0 0.0
        %443 = vmatpush1.xpose.msra.mxu0 0.0
        %444 = vmatprep.subr.mxu0 0.0
        %445 = vmatpush1.xpose.msra.mxu0 0.0
        %446 = vmatprep.subr.mxu0 0.0
        %447 = vmatpush1.xpose.msra.mxu0 0.0
        %448 = vmatprep.subr.mxu0 0.0
        %449 = vmatpush1.xpose.msra.mxu0 0.0
        %450 = vmatprep.subr.mxu0 0.0
        %451 = vmatpush1.xpose.msra.mxu0 0.0
        %452 = vmatprep.subr.mxu0 0.0
        %453 = vmatpush1.xpose.msra.mxu0 0.0
        %454 = vmatprep.subr.mxu0 0.0
        %455 = vmatpush1.xpose.msra.mxu0 0.0
        %456 = vmatprep.subr.mxu0 0.0
        %457 = vmatpush1.xpose.msra.mxu0 0.0
        %458 = vmatprep.subr.mxu0 0.0
        %459 = vmatpush1.xpose.msra.mxu0 0.0
        %460 = vmatprep.subr.mxu0 0.0
        %461 = vmatpush1.xpose.msra.mxu0 0.0
        %462 = vmatprep.subr.mxu0 0.0
        %463 = vmatpush1.xpose.msra.mxu0 0.0
        %464 = vmatprep.subr.mxu0 0.0
        %465 = vmatpush1.xpose.msra.mxu0 0.0
        %466 = vmatprep.subr.mxu0 0.0
        %467 = vmatpush1.xpose.msra.mxu0 0.0
        %468 = vmatprep.subr.mxu0 0.0
        %469 = vmatpush1.xpose.msra.mxu0 0.0
        %470 = vmatprep.subr.mxu0 0.0
        %471 = vmatpush1.xpose.msra.mxu0 0.0
        %472 = vmatprep.subr.mxu0 0.0
        %473 = vmatpush1.xpose.msra.mxu0 0.0
        %474 = vmatprep.subr.mxu0 0.0
        %475 = vmatpush1.xpose.msra.mxu0 0.0
        %476 = vmatprep.subr.mxu0 0.0
        %477 = vmatpush1.xpose.msra.mxu0 0.0
        %478 = vmatprep.subr.mxu0 0.0
        %479 = vmatpush1.xpose.msra.mxu0 0.0
        %480 = vmatprep.subr.mxu0 0.0
        %481 = vmatpush1.xpose.msra.mxu0 0.0
        %482 = vmatprep.subr.mxu0 0.0
        %483 = vmatpush1.xpose.msra.mxu0 0.0
        %484 = vmatprep.subr.mxu0 0.0
        %485 = vmatpush1.xpose.msra.mxu0 0.0
        %486 = vmatprep.subr.mxu0 0.0
        %487 = vmatpush1.xpose.msra.mxu0 0.0
        %488 = vmatprep.subr.mxu0 0.0
        %489 = vmatpush1.xpose.msra.mxu0 0.0
        %490 = vmatprep.subr.mxu0 0.0
        %491 = vmatpush1.xpose.msra.mxu0 0.0
        %492 = vmatprep.subr.mxu0 0.0
        %493 = vmatpush1.xpose.msra.mxu0 0.0
        %494 = vmatprep.subr.mxu0 0.0
        %495 = vmatpush1.xpose.msra.mxu0 0.0
        %496 = vmatprep.subr.mxu0 0.0
        %497 = vmatpush1.xpose.msra.mxu0 0.0
        %498 = vmatprep.mubr.f32.mxu0 0.0
        %499 = vmatmul.mubr.f32.gmra.mrb[0].mxu0 %v430
        %v500 = vpop.f32.mrb[0].mxu0
        %v501 = vadd.f32 %v423, %v500
        %v502 = vpop.f32.mrb[0].mxu0
        %503 = vdwg.mxu0
        %v504 = vsel %vm428, %v501, -inf
        %505 = vmax.xlane.f32.xlu0 %v504
        %v506 = vpop.xlane.xlu0 %505
        %v507 = vsub.f32 %v501, %v506
        %v508 = vmul.f32 %v507, 1.442695
        %v509 = vpow.pop %v508
        %v510 = vsel %vm428, %v509, 0.0
        %511 = vadd.xlane.f32.xlu0 %v510
        %v512 = vpop.xlane.xlu0 %511
        %v513 = vrcp.pop %v512
        %v514 = vmul.f32 %v509, %v513
        %515 = vrot.lane.b32.xlu0 %v415, 64
        %v516 = vpop.permute.xlu0 %515
        %v519 = vsel %vm428, %v514, 0
        %521 = vmatprep.subr.mxu0 0.0
        %522 = vmatpush1.msra.mxu0 %v516
        %523 = vmatprep.subr.mxu0 0.0
        %524 = vmatpush1.msra.mxu0 0.0
        %525 = vmatprep.subr.mxu0 0.0
        %526 = vmatpush1.msra.mxu0 0.0
        %527 = vmatprep.subr.mxu0 0.0
        %528 = vmatpush1.msra.mxu0 0.0
        %529 = vmatprep.subr.mxu0 0.0
        %530 = vmatpush1.msra.mxu0 0.0
        %531 = vmatprep.subr.mxu0 0.0
        %532 = vmatpush1.msra.mxu0 0.0
        %533 = vmatprep.subr.mxu0 0.0
        %534 = vmatpush1.msra.mxu0 0.0
        %535 = vmatprep.subr.mxu0 0.0
        %536 = vmatpush1.msra.mxu0 0.0
        %537 = vmatprep.subr.mxu0 0.0
        %538 = vmatpush1.msra.mxu0 0.0
        %539 = vmatprep.subr.mxu0 0.0
        %540 = vmatpush1.msra.mxu0 0.0
        %541 = vmatprep.subr.mxu0 0.0
        %542 = vmatpush1.msra.mxu0 0.0
        %543 = vmatprep.subr.mxu0 0.0
        %544 = vmatpush1.msra.mxu0 0.0
        %545 = vmatprep.subr.mxu0 0.0
        %546 = vmatpush1.msra.mxu0 0.0
        %547 = vmatprep.subr.mxu0 0.0
        %548 = vmatpush1.msra.mxu0 0.0
        %549 = vmatprep.subr.mxu0 0.0
        %550 = vmatpush1.msra.mxu0 0.0
        %551 = vmatprep.subr.mxu0 0.0
        %552 = vmatpush1.msra.mxu0 0.0
        %553 = vmatprep.subr.mxu0 0.0
        %554 = vmatpush1.msra.mxu0 0.0
        %555 = vmatprep.subr.mxu0 0.0
        %556 = vmatpush1.msra.mxu0 0.0
        %557 = vmatprep.subr.mxu0 0.0
        %558 = vmatpush1.msra.mxu0 0.0
        %559 = vmatprep.subr.mxu0 0.0
        %560 = vmatpush1.msra.mxu0 0.0
        %561 = vmatprep.subr.mxu0 0.0
        %562 = vmatpush1.msra.mxu0 0.0
        %563 = vmatprep.subr.mxu0 0.0
        %564 = vmatpush1.msra.mxu0 0.0
        %565 = vmatprep.subr.mxu0 0.0
        %566 = vmatpush1.msra.mxu0 0.0
        %567 = vmatprep.subr.mxu0 0.0
        %568 = vmatpush1.msra.mxu0 0.0
        %569 = vmatprep.subr.mxu0 0.0
        %570 = vmatpush1.msra.mxu0 0.0
        %571 = vmatprep.subr.mxu0 0.0
        %572 = vmatpush1.msra.mxu0 0.0
        %573 = vmatprep.subr.mxu0 0.0
        %574 = vmatpush1.msra.mxu0 0.0
        %575 = vmatprep.subr.mxu0 0.0
        %576 = vmatpush1.msra.mxu0 0.0
        %577 = vmatprep.subr.mxu0 0.0
        %578 = vmatpush1.msra.mxu0 0.0
        %579 = vmatprep.subr.mxu0 0.0
        %580 = vmatpush1.msra.mxu0 0.0
        %581 = vmatprep.subr.mxu0 0.0
        %582 = vmatpush1.msra.mxu0 0.0
        %583 = vmatprep.subr.mxu0 0.0
        %584 = vmatpush1.msra.mxu0 0.0
        %585 = vmatprep.mubr.f32.mxu0 0.0
        %586 = vmatmul.mubr.f32.gmra.mrb[0].mxu0 %v519
        %v587 = vpop.f32.mrb[0].mxu0
        %v588 = vadd.f32 0.0, %v587
        %v589 = vpop.f32.mrb[0].mxu0
        %590 = vdwg.mxu0
        %591 = vrot.lane.b32.xlu0 %v418, 120
        %v592 = vpop.permute.xlu0 %591
        %593 = vrot.lane.b32.xlu0 %v415, 88
        %v594 = vpop.permute.xlu0 %593
        %v595 = vsel %vm428, %v592, 0
        %v597 = vsel %vm428, %v594, 0
        %599 = vmatprep.subr.mxu0 0.0
        %600 = vmatpush1.xpose.msra.mxu0 %v597
        %601 = vmatprep.subr.mxu0 0.0
        %602 = vmatpush1.xpose.msra.mxu0 0.0
        %603 = vmatprep.subr.mxu0 0.0
        %604 = vmatpush1.xpose.msra.mxu0 0.0
        %605 = vmatprep.subr.mxu0 0.0
        %606 = vmatpush1.xpose.msra.mxu0 0.0
        %607 = vmatprep.subr.mxu0 0.0
        %608 = vmatpush1.xpose.msra.mxu0 0.0
        %609 = vmatprep.subr.mxu0 0.0
        %610 = vmatpush1.xpose.msra.mxu0 0.0
        %611 = vmatprep.subr.mxu0 0.0
        %612 = vmatpush1.xpose.msra.mxu0 0.0
        %613 = vmatprep.subr.mxu0 0.0
        %614 = vmatpush1.xpose.msra.mxu0 0.0
        %615 = vmatprep.subr.mxu0 0.0
        %616 = vmatpush1.xpose.msra.mxu0 0.0
        %617 = vmatprep.subr.mxu0 0.0
        %618 = vmatpush1.xpose.msra.mxu0 0.0
        %619 = vmatprep.subr.mxu0 0.0
        %620 = vmatpush1.xpose.msra.mxu0 0.0
        %621 = vmatprep.subr.mxu0 0.0
        %622 = vmatpush1.xpose.msra.mxu0 0.0
        %623 = vmatprep.subr.mxu0 0.0
        %624 = vmatpush1.xpose.msra.mxu0 0.0
        %625 = vmatprep.subr.mxu0 0.0
        %626 = vmatpush1.xpose.msra.mxu0 0.0
        %627 = vmatprep.subr.mxu0 0.0
        %628 = vmatpush1.xpose.msra.mxu0 0.0
        %629 = vmatprep.subr.mxu0 0.0
        %630 = vmatpush1.xpose.msra.mxu0 0.0
        %631 = vmatprep.subr.mxu0 0.0
        %632 = vmatpush1.xpose.msra.mxu0 0.0
        %633 = vmatprep.subr.mxu0 0.0
        %634 = vmatpush1.xpose.msra.mxu0 0.0
        %635 = vmatprep.subr.mxu0 0.0
        %636 = vmatpush1.xpose.msra.mxu0 0.0
        %637 = vmatprep.subr.mxu0 0.0
        %638 = vmatpush1.xpose.msra.mxu0 0.0
        %639 = vmatprep.subr.mxu0 0.0
        %640 = vmatpush1.xpose.msra.mxu0 0.0
        %641 = vmatprep.subr.mxu0 0.0
        %642 = vmatpush1.xpose.msra.mxu0 0.0
        %643 = vmatprep.subr.mxu0 0.0
        %644 = vmatpush1.xpose.msra.mxu0 0.0
        %645 = vmatprep.subr.mxu0 0.0
        %646 = vmatpush1.xpose.msra.mxu0 0.0
        %647 = vmatprep.subr.mxu0 0.0
        %648 = vmatpush1.xpose.msra.mxu0 0.0
        %649 = vmatprep.subr.mxu0 0.0
        %650 = vmatpush1.xpose.msra.mxu0 0.0
        %651 = vmatprep.subr.mxu0 0.0
        %652 = vmatpush1.xpose.msra.mxu0 0.0
        %653 = vmatprep.subr.mxu0 0.0
        %654 = vmatpush1.xpose.msra.mxu0 0.0
        %655 = vmatprep.subr.mxu0 0.0
        %656 = vmatpush1.xpose.msra.mxu0 0.0
        %657 = vmatprep.subr.mxu0 0.0
        %658 = vmatpush1.xpose.msra.mxu0 0.0
        %659 = vmatprep.subr.mxu0 0.0
        %660 = vmatpush1.xpose.msra.mxu0 0.0
        %661 = vmatprep.subr.mxu0 0.0
        %662 = vmatpush1.xpose.msra.mxu0 0.0
        %663 = vmatprep.mubr.f32.mxu0 0.0
        %664 = vmatmul.mubr.f32.gmra.mrb[0].mxu0 %v595
        %v665 = vpop.f32.mrb[0].mxu0
        %v666 = vadd.f32 %v423, %v665
        %v667 = vpop.f32.mrb[0].mxu0
        %668 = vdwg.mxu0
        %v669 = vsel %vm428, %v666, -inf
        %670 = vmax.xlane.f32.xlu0 %v669
        %v671 = vpop.xlane.xlu0 %670
        %v672 = vsub.f32 %v666, %v671
        %v673 = vmul.f32 %v672, 1.442695
        %v674 = vpow.pop %v673
        %v675 = vsel %vm428, %v674, 0.0
        %676 = vadd.xlane.f32.xlu0 %v675
        %v677 = vpop.xlane.xlu0 %676
        %v678 = vrcp.pop %v677
        %v679 = vmul.f32 %v674, %v678
        %680 = vrot.lane.b32.xlu0 %v415, 56
        %v681 = vpop.permute.xlu0 %680
        %v684 = vsel %vm428, %v679, 0
        %686 = vmatprep.subr.mxu0 0.0
        %687 = vmatpush1.msra.mxu0 %v681
        %688 = vmatprep.subr.mxu0 0.0
        %689 = vmatpush1.msra.mxu0 0.0
        %690 = vmatprep.subr.mxu0 0.0
        %691 = vmatpush1.msra.mxu0 0.0
        %692 = vmatprep.subr.mxu0 0.0
        %693 = vmatpush1.msra.mxu0 0.0
        %694 = vmatprep.subr.mxu0 0.0
        %695 = vmatpush1.msra.mxu0 0.0
        %696 = vmatprep.subr.mxu0 0.0
        %697 = vmatpush1.msra.mxu0 0.0
        %698 = vmatprep.subr.mxu0 0.0
        %699 = vmatpush1.msra.mxu0 0.0
        %700 = vmatprep.subr.mxu0 0.0
        %701 = vmatpush1.msra.mxu0 0.0
        %702 = vmatprep.subr.mxu0 0.0
        %703 = vmatpush1.msra.mxu0 0.0
        %704 = vmatprep.subr.mxu0 0.0
        %705 = vmatpush1.msra.mxu0 0.0
        %706 = vmatprep.subr.mxu0 0.0
        %707 = vmatpush1.msra.mxu0 0.0
        %708 = vmatprep.subr.mxu0 0.0
        %709 = vmatpush1.msra.mxu0 0.0
        %710 = vmatprep.subr.mxu0 0.0
        %711 = vmatpush1.msra.mxu0 0.0
        %712 = vmatprep.subr.mxu0 0.0
        %713 = vmatpush1.msra.mxu0 0.0
        %714 = vmatprep.subr.mxu0 0.0
        %715 = vmatpush1.msra.mxu0 0.0
        %716 = vmatprep.subr.mxu0 0.0
        %717 = vmatpush1.msra.mxu0 0.0
        %718 = vmatprep.subr.mxu0 0.0
        %719 = vmatpush1.msra.mxu0 0.0
        %720 = vmatprep.subr.mxu0 0.0
        %721 = vmatpush1.msra.mxu0 0.0
        %722 = vmatprep.subr.mxu0 0.0
        %723 = vmatpush1.msra.mxu0 0.0
        %724 = vmatprep.subr.mxu0 0.0
        %725 = vmatpush1.msra.mxu0 0.0
        %726 = vmatprep.subr.mxu0 0.0
        %727 = vmatpush1.msra.mxu0 0.0
        %728 = vmatprep.subr.mxu0 0.0
        %729 = vmatpush1.msra.mxu0 0.0
        %730 = vmatprep.subr.mxu0 0.0
        %731 = vmatpush1.msra.mxu0 0.0
        %732 = vmatprep.subr.mxu0 0.0
        %733 = vmatpush1.msra.mxu0 0.0
        %734 = vmatprep.subr.mxu0 0.0
        %735 = vmatpush1.msra.mxu0 0.0
        %736 = vmatprep.subr.mxu0 0.0
        %737 = vmatpush1.msra.mxu0 0.0
        %738 = vmatprep.subr.mxu0 0.0
        %739 = vmatpush1.msra.mxu0 0.0
        %740 = vmatprep.subr.mxu0 0.0
        %741 = vmatpush1.msra.mxu0 0.0
        %742 = vmatprep.subr.mxu0 0.0
        %743 = vmatpush1.msra.mxu0 0.0
        %744 = vmatprep.subr.mxu0 0.0
        %745 = vmatpush1.msra.mxu0 0.0
        %746 = vmatprep.subr.mxu0 0.0
        %747 = vmatpush1.msra.mxu0 0.0
        %748 = vmatprep.subr.mxu0 0.0
        %749 = vmatpush1.msra.mxu0 0.0
        %750 = vmatprep.mubr.f32.mxu0 0.0
        %751 = vmatmul.mubr.f32.gmra.mrb[0].mxu0 %v684
        %v752 = vpop.f32.mrb[0].mxu0
        %v753 = vadd.f32 0.0, %v752
        %v754 = vpop.f32.mrb[0].mxu0
        %755 = vdwg.mxu0
        %756 = vrot.lane.b32.xlu0 %v418, 112
        %v757 = vpop.permute.xlu0 %756
        %758 = vrot.lane.b32.xlu0 %v415, 80
        %v759 = vpop.permute.xlu0 %758
        %v760 = vsel %vm428, %v757, 0
        %v762 = vsel %vm428, %v759, 0
        %764 = vmatprep.subr.mxu0 0.0
        %765 = vmatpush1.xpose.msra.mxu0 %v762
        %766 = vmatprep.subr.mxu0 0.0
        %767 = vmatpush1.xpose.msra.mxu0 0.0
        %768 = vmatprep.subr.mxu0 0.0
        %769 = vmatpush1.xpose.msra.mxu0 0.0
        %770 = vmatprep.subr.mxu0 0.0
        %771 = vmatpush1.xpose.msra.mxu0 0.0
        %772 = vmatprep.subr.mxu0 0.0
        %773 = vmatpush1.xpose.msra.mxu0 0.0
        %774 = vmatprep.subr.mxu0 0.0
        %775 = vmatpush1.xpose.msra.mxu0 0.0
        %776 = vmatprep.subr.mxu0 0.0
        %777 = vmatpush1.xpose.msra.mxu0 0.0
        %778 = vmatprep.subr.mxu0 0.0
        %779 = vmatpush1.xpose.msra.mxu0 0.0
        %780 = vmatprep.subr.mxu0 0.0
        %781 = vmatpush1.xpose.msra.mxu0 0.0
        %782 = vmatprep.subr.mxu0 0.0
        %783 = vmatpush1.xpose.msra.mxu0 0.0
        %784 = vmatprep.subr.mxu0 0.0
        %785 = vmatpush1.xpose.msra.mxu0 0.0
        %786 = vmatprep.subr.mxu0 0.0
        %787 = vmatpush1.xpose.msra.mxu0 0.0
        %788 = vmatprep.subr.mxu0 0.0
        %789 = vmatpush1.xpose.msra.mxu0 0.0
        %790 = vmatprep.subr.mxu0 0.0
        %791 = vmatpush1.xpose.msra.mxu0 0.0
        %792 = vmatprep.subr.mxu0 0.0
        %793 = vmatpush1.xpose.msra.mxu0 0.0
        %794 = vmatprep.subr.mxu0 0.0
        %795 = vmatpush1.xpose.msra.mxu0 0.0
        %796 = vmatprep.subr.mxu0 0.0
        %797 = vmatpush1.xpose.msra.mxu0 0.0
        %798 = vmatprep.subr.mxu0 0.0
        %799 = vmatpush1.xpose.msra.mxu0 0.0
        %800 = vmatprep.subr.mxu0 0.0
        %801 = vmatpush1.xpose.msra.mxu0 0.0
        %802 = vmatprep.subr.mxu0 0.0
        %803 = vmatpush1.xpose.msra.mxu0 0.0
        %804 = vmatprep.subr.mxu0 0.0
        %805 = vmatpush1.xpose.msra.mxu0 0.0
        %806 = vmatprep.subr.mxu0 0.0
        %807 = vmatpush1.xpose.msra.mxu0 0.0
        %808 = vmatprep.subr.mxu0 0.0
        %809 = vmatpush1.xpose.msra.mxu0 0.0
        %810 = vmatprep.subr.mxu0 0.0
        %811 = vmatpush1.xpose.msra.mxu0 0.0
        %812 = vmatprep.subr.mxu0 0.0
        %813 = vmatpush1.xpose.msra.mxu0 0.0
        %814 = vmatprep.subr.mxu0 0.0
        %815 = vmatpush1.xpose.msra.mxu0 0.0
        %816 = vmatprep.subr.mxu0 0.0
        %817 = vmatpush1.xpose.msra.mxu0 0.0
        %818 = vmatprep.subr.mxu0 0.0
        %819 = vmatpush1.xpose.msra.mxu0 0.0
        %820 = vmatprep.subr.mxu0 0.0
        %821 = vmatpush1.xpose.msra.mxu0 0.0
        %822 = vmatprep.subr.mxu0 0.0
        %823 = vmatpush1.xpose.msra.mxu0 0.0
        %824 = vmatprep.subr.mxu0 0.0
        %825 = vmatpush1.xpose.msra.mxu0 0.0
        %826 = vmatprep.subr.mxu0 0.0
        %827 = vmatpush1.xpose.msra.mxu0 0.0
        %828 = vmatprep.mubr.f32.mxu0 0.0
        %829 = vmatmul.mubr.f32.gmra.mrb[0].mxu0 %v760
        %v830 = vpop.f32.mrb[0].mxu0
        %v831 = vadd.f32 %v423, %v830
        %v832 = vpop.f32.mrb[0].mxu0
        %833 = vdwg.mxu0
        %v834 = vsel %vm428, %v831, -inf
        %835 = vmax.xlane.f32.xlu0 %v834
        %v836 = vpop.xlane.xlu0 %835
        %v837 = vsub.f32 %v831, %v836
        %v838 = vmul.f32 %v837, 1.442695
        %v839 = vpow.pop %v838
        %v840 = vsel %vm428, %v839, 0.0
        %841 = vadd.xlane.f32.xlu0 %v840
        %v842 = vpop.xlane.xlu0 %841
        %v843 = vrcp.pop %v842
        %v844 = vmul.f32 %v839, %v843
        %845 = vrot.lane.b32.xlu0 %v415, 48
        %v846 = vpop.permute.xlu0 %845
        %v849 = vsel %vm428, %v844, 0
        %851 = vmatprep.subr.mxu0 0.0
        %852 = vmatpush1.msra.mxu0 %v846
        %853 = vmatprep.subr.mxu0 0.0
        %854 = vmatpush1.msra.mxu0 0.0
        %855 = vmatprep.subr.mxu0 0.0
        %856 = vmatpush1.msra.mxu0 0.0
        %857 = vmatprep.subr.mxu0 0.0
        %858 = vmatpush1.msra.mxu0 0.0
        %859 = vmatprep.subr.mxu0 0.0
        %860 = vmatpush1.msra.mxu0 0.0
        %861 = vmatprep.subr.mxu0 0.0
        %862 = vmatpush1.msra.mxu0 0.0
        %863 = vmatprep.subr.mxu0 0.0
        %864 = vmatpush1.msra.mxu0 0.0
        %865 = vmatprep.subr.mxu0 0.0
        %866 = vmatpush1.msra.mxu0 0.0
        %867 = vmatprep.subr.mxu0 0.0
        %868 = vmatpush1.msra.mxu0 0.0
        %869 = vmatprep.subr.mxu0 0.0
        %870 = vmatpush1.msra.mxu0 0.0
        %871 = vmatprep.subr.mxu0 0.0
        %872 = vmatpush1.msra.mxu0 0.0
        %873 = vmatprep.subr.mxu0 0.0
        %874 = vmatpush1.msra.mxu0 0.0
        %875 = vmatprep.subr.mxu0 0.0
        %876 = vmatpush1.msra.mxu0 0.0
        %877 = vmatprep.subr.mxu0 0.0
        %878 = vmatpush1.msra.mxu0 0.0
        %879 = vmatprep.subr.mxu0 0.0
        %880 = vmatpush1.msra.mxu0 0.0
        %881 = vmatprep.subr.mxu0 0.0
        %882 = vmatpush1.msra.mxu0 0.0
        %883 = vmatprep.subr.mxu0 0.0
        %884 = vmatpush1.msra.mxu0 0.0
        %885 = vmatprep.subr.mxu0 0.0
        %886 = vmatpush1.msra.mxu0 0.0
        %887 = vmatprep.subr.mxu0 0.0
        %888 = vmatpush1.msra.mxu0 0.0
        %889 = vmatprep.subr.mxu0 0.0
        %890 = vmatpush1.msra.mxu0 0.0
        %891 = vmatprep.subr.mxu0 0.0
        %892 = vmatpush1.msra.mxu0 0.0
        %893 = vmatprep.subr.mxu0 0.0
        %894 = vmatpush1.msra.mxu0 0.0
        %895 = vmatprep.subr.mxu0 0.0
        %896 = vmatpush1.msra.mxu0 0.0
        %897 = vmatprep.subr.mxu0 0.0
        %898 = vmatpush1.msra.mxu0 0.0
        %899 = vmatprep.subr.mxu0 0.0
        %900 = vmatpush1.msra.mxu0 0.0
        %901 = vmatprep.subr.mxu0 0.0
        %902 = vmatpush1.msra.mxu0 0.0
        %903 = vmatprep.subr.mxu0 0.0
        %904 = vmatpush1.msra.mxu0 0.0
        %905 = vmatprep.subr.mxu0 0.0
        %906 = vmatpush1.msra.mxu0 0.0
        %907 = vmatprep.subr.mxu0 0.0
        %908 = vmatpush1.msra.mxu0 0.0
        %909 = vmatprep.subr.mxu0 0.0
        %910 = vmatpush1.msra.mxu0 0.0
        %911 = vmatprep.subr.mxu0 0.0
        %912 = vmatpush1.msra.mxu0 0.0
        %913 = vmatprep.subr.mxu0 0.0
        %914 = vmatpush1.msra.mxu0 0.0
        %915 = vmatprep.mubr.f32.mxu0 0.0
        %916 = vmatmul.mubr.f32.gmra.mrb[0].mxu0 %v849
        %v917 = vpop.f32.mrb[0].mxu0
        %v918 = vadd.f32 0.0, %v917
        %v919 = vpop.f32.mrb[0].mxu0
        %920 = vdwg.mxu0
        %921 = vrot.lane.b32.xlu0 %v418, 104
        %v922 = vpop.permute.xlu0 %921
        %923 = vrot.lane.b32.xlu0 %v415, 72
        %v924 = vpop.permute.xlu0 %923
        %v925 = vsel %vm428, %v922, 0
        %v927 = vsel %vm428, %v924, 0
        %929 = vmatprep.subr.mxu0 0.0
        %930 = vmatpush1.xpose.msra.mxu0 %v927
        %931 = vmatprep.subr.mxu0 0.0
        %932 = vmatpush1.xpose.msra.mxu0 0.0
        %933 = vmatprep.subr.mxu0 0.0
        %934 = vmatpush1.xpose.msra.mxu0 0.0
        %935 = vmatprep.subr.mxu0 0.0
        %936 = vmatpush1.xpose.msra.mxu0 0.0
        %937 = vmatprep.subr.mxu0 0.0
        %938 = vmatpush1.xpose.msra.mxu0 0.0
        %939 = vmatprep.subr.mxu0 0.0
        %940 = vmatpush1.xpose.msra.mxu0 0.0
        %941 = vmatprep.subr.mxu0 0.0
        %942 = vmatpush1.xpose.msra.mxu0 0.0
        %943 = vmatprep.subr.mxu0 0.0
        %944 = vmatpush1.xpose.msra.mxu0 0.0
        %945 = vmatprep.subr.mxu0 0.0
        %946 = vmatpush1.xpose.msra.mxu0 0.0
        %947 = vmatprep.subr.mxu0 0.0
        %948 = vmatpush1.xpose.msra.mxu0 0.0
        %949 = vmatprep.subr.mxu0 0.0
        %950 = vmatpush1.xpose.msra.mxu0 0.0
        %951 = vmatprep.subr.mxu0 0.0
        %952 = vmatpush1.xpose.msra.mxu0 0.0
        %953 = vmatprep.subr.mxu0 0.0
        %954 = vmatpush1.xpose.msra.mxu0 0.0
        %955 = vmatprep.subr.mxu0 0.0
        %956 = vmatpush1.xpose.msra.mxu0 0.0
        %957 = vmatprep.subr.mxu0 0.0
        %958 = vmatpush1.xpose.msra.mxu0 0.0
        %959 = vmatprep.subr.mxu0 0.0
        %960 = vmatpush1.xpose.msra.mxu0 0.0
        %961 = vmatprep.subr.mxu0 0.0
        %962 = vmatpush1.xpose.msra.mxu0 0.0
        %963 = vmatprep.subr.mxu0 0.0
        %964 = vmatpush1.xpose.msra.mxu0 0.0
        %965 = vmatprep.subr.mxu0 0.0
        %966 = vmatpush1.xpose.msra.mxu0 0.0
        %967 = vmatprep.subr.mxu0 0.0
        %968 = vmatpush1.xpose.msra.mxu0 0.0
        %969 = vmatprep.subr.mxu0 0.0
        %970 = vmatpush1.xpose.msra.mxu0 0.0
        %971 = vmatprep.subr.mxu0 0.0
        %972 = vmatpush1.xpose.msra.mxu0 0.0
        %973 = vmatprep.subr.mxu0 0.0
        %974 = vmatpush1.xpose.msra.mxu0 0.0
        %975 = vmatprep.subr.mxu0 0.0
        %976 = vmatpush1.xpose.msra.mxu0 0.0
        %977 = vmatprep.subr.mxu0 0.0
        %978 = vmatpush1.xpose.msra.mxu0 0.0
        %979 = vmatprep.subr.mxu0 0.0
        %980 = vmatpush1.xpose.msra.mxu0 0.0
        %981 = vmatprep.subr.mxu0 0.0
        %982 = vmatpush1.xpose.msra.mxu0 0.0
        %983 = vmatprep.subr.mxu0 0.0
        %984 = vmatpush1.xpose.msra.mxu0 0.0
        %985 = vmatprep.subr.mxu0 0.0
        %986 = vmatpush1.xpose.msra.mxu0 0.0
        %987 = vmatprep.subr.mxu0 0.0
        %988 = vmatpush1.xpose.msra.mxu0 0.0
        %989 = vmatprep.subr.mxu0 0.0
        %990 = vmatpush1.xpose.msra.mxu0 0.0
        %991 = vmatprep.subr.mxu0 0.0
        %992 = vmatpush1.xpose.msra.mxu0 0.0
        %993 = vmatprep.mubr.f32.mxu0 0.0
        %994 = vmatmul.mubr.f32.gmra.mrb[0].mxu0 %v925
        %v995 = vpop.f32.mrb[0].mxu0
        %v996 = vadd.f32 %v423, %v995
        %v997 = vpop.f32.mrb[0].mxu0
        %998 = vdwg.mxu0
        %v999 = vsel %vm428, %v996, -inf
        %1000 = vmax.xlane.f32.xlu0 %v999
        %v1001 = vpop.xlane.xlu0 %1000
        %v1002 = vsub.f32 %v996, %v1001
        %v1003 = vmul.f32 %v1002, 1.442695
        %v1004 = vpow.pop %v1003
        %v1005 = vsel %vm428, %v1004, 0.0
        %1006 = vadd.xlane.f32.xlu0 %v1005
        %v1007 = vpop.xlane.xlu0 %1006
        %v1008 = vrcp.pop %v1007
        %v1009 = vmul.f32 %v1004, %v1008
        %1010 = vrot.lane.b32.xlu0 %v415, 40
        %v1011 = vpop.permute.xlu0 %1010
        %v1014 = vsel %vm428, %v1009, 0
        %1016 = vmatprep.subr.mxu0 0.0
        %1017 = vmatpush1.msra.mxu0 %v1011
        %1018 = vmatprep.subr.mxu0 0.0
        %1019 = vmatpush1.msra.mxu0 0.0
        %1020 = vmatprep.subr.mxu0 0.0
        %1021 = vmatpush1.msra.mxu0 0.0
        %1022 = vmatprep.subr.mxu0 0.0
        %1023 = vmatpush1.msra.mxu0 0.0
        %1024 = vmatprep.subr.mxu0 0.0
        %1025 = vmatpush1.msra.mxu0 0.0
        %1026 = vmatprep.subr.mxu0 0.0
        %1027 = vmatpush1.msra.mxu0 0.0
        %1028 = vmatprep.subr.mxu0 0.0
        %1029 = vmatpush1.msra.mxu0 0.0
        %1030 = vmatprep.subr.mxu0 0.0
        %1031 = vmatpush1.msra.mxu0 0.0
        %1032 = vmatprep.subr.mxu0 0.0
        %1033 = vmatpush1.msra.mxu0 0.0
        %1034 = vmatprep.subr.mxu0 0.0
        %1035 = vmatpush1.msra.mxu0 0.0
        %1036 = vmatprep.subr.mxu0 0.0
        %1037 = vmatpush1.msra.mxu0 0.0
        %1038 = vmatprep.subr.mxu0 0.0
        %1039 = vmatpush1.msra.mxu0 0.0
        %1040 = vmatprep.subr.mxu0 0.0
        %1041 = vmatpush1.msra.mxu0 0.0
        %1042 = vmatprep.subr.mxu0 0.0
        %1043 = vmatpush1.msra.mxu0 0.0
        %1044 = vmatprep.subr.mxu0 0.0
        %1045 = vmatpush1.msra.mxu0 0.0
        %1046 = vmatprep.subr.mxu0 0.0
        %1047 = vmatpush1.msra.mxu0 0.0
        %1048 = vmatprep.subr.mxu0 0.0
        %1049 = vmatpush1.msra.mxu0 0.0
        %1050 = vmatprep.subr.mxu0 0.0
        %1051 = vmatpush1.msra.mxu0 0.0
        %1052 = vmatprep.subr.mxu0 0.0
        %1053 = vmatpush1.msra.mxu0 0.0
        %1054 = vmatprep.subr.mxu0 0.0
        %1055 = vmatpush1.msra.mxu0 0.0
        %1056 = vmatprep.subr.mxu0 0.0
        %1057 = vmatpush1.msra.mxu0 0.0
        %1058 = vmatprep.subr.mxu0 0.0
        %1059 = vmatpush1.msra.mxu0 0.0
        %1060 = vmatprep.subr.mxu0 0.0
        %1061 = vmatpush1.msra.mxu0 0.0
        %1062 = vmatprep.subr.mxu0 0.0
        %1063 = vmatpush1.msra.mxu0 0.0
        %1064 = vmatprep.subr.mxu0 0.0
        %1065 = vmatpush1.msra.mxu0 0.0
        %1066 = vmatprep.subr.mxu0 0.0
        %1067 = vmatpush1.msra.mxu0 0.0
        %1068 = vmatprep.subr.mxu0 0.0
        %1069 = vmatpush1.msra.mxu0 0.0
        %1070 = vmatprep.subr.mxu0 0.0
        %1071 = vmatpush1.msra.mxu0 0.0
        %1072 = vmatprep.subr.mxu0 0.0
        %1073 = vmatpush1.msra.mxu0 0.0
        %1074 = vmatprep.subr.mxu0 0.0
        %1075 = vmatpush1.msra.mxu0 0.0
        %1076 = vmatprep.subr.mxu0 0.0
        %1077 = vmatpush1.msra.mxu0 0.0
        %1078 = vmatprep.subr.mxu0 0.0
        %1079 = vmatpush1.msra.mxu0 0.0
        %1080 = vmatprep.mubr.f32.mxu0 0.0
        %1081 = vmatmul.mubr.f32.gmra.mrb[0].mxu0 %v1014
        %v1082 = vpop.f32.mrb[0].mxu0
        %v1083 = vadd.f32 0.0, %v1082
        %v1084 = vpop.f32.mrb[0].mxu0
        %1085 = vdwg.mxu0
        %1087 = vrot.lane.b32.xlu0 %v753, 8
        %v1088 = vpop.permute.xlu0 %1087
        %1091 = vrot.lane.b32.xlu0 %v918, 16
        %v1092 = vpop.permute.xlu0 %1091
        %1095 = vrot.lane.b32.xlu0 %v1083, 24
        %v1096 = vpop.permute.xlu0 %1095
        %v1098 = vsel %vm428, %v588, %v1088
        %vm1099 = vcmask 130048
        %v1100 = vsel %vm1099, %v1098, %v1092
        %vm1101 = vcmask 195584
        %v1102 = vsel %vm1101, %v1100, %v1096
        %v1103 = vlaneseq
        %v1104 = vshrl.u32 %v1103, 7
        %v1105 = vsub.s32 0, %v1104
        %v1106 = vrot.slane %v333, %v1105
        %v1108 = vsel %vm344, %v1102, 0
        %1110 = vmatprep.subr.mxu0 0.0
        %1111 = vmatpush1.msra.mxu0 %v316
        %1112 = vmatprep.subr.mxu0 0.0
        %1113 = vmatpush1.msra.mxu0 %v317
        %1114 = vmatprep.subr.mxu0 0.0
        %1115 = vmatpush1.msra.mxu0 %v318
        %1116 = vmatprep.subr.mxu0 0.0
        %1117 = vmatpush1.msra.mxu0 %v319
        %1118 = vmatprep.subr.mxu0 0.0
        %1119 = vmatpush1.msra.mxu0 0.0
        %1120 = vmatprep.subr.mxu0 0.0
        %1121 = vmatpush1.msra.mxu0 0.0
        %1122 = vmatprep.subr.mxu0 0.0
        %1123 = vmatpush1.msra.mxu0 0.0
        %1124 = vmatprep.subr.mxu0 0.0
        %1125 = vmatpush1.msra.mxu0 0.0
        %1126 = vmatprep.subr.mxu0 0.0
        %1127 = vmatpush1.msra.mxu0 0.0
        %1128 = vmatprep.subr.mxu0 0.0
        %1129 = vmatpush1.msra.mxu0 0.0
        %1130 = vmatprep.subr.mxu0 0.0
        %1131 = vmatpush1.msra.mxu0 0.0
        %1132 = vmatprep.subr.mxu0 0.0
        %1133 = vmatpush1.msra.mxu0 0.0
        %1134 = vmatprep.subr.mxu0 0.0
        %1135 = vmatpush1.msra.mxu0 0.0
        %1136 = vmatprep.subr.mxu0 0.0
        %1137 = vmatpush1.msra.mxu0 0.0
        %1138 = vmatprep.subr.mxu0 0.0
        %1139 = vmatpush1.msra.mxu0 0.0
        %1140 = vmatprep.subr.mxu0 0.0
        %1141 = vmatpush1.msra.mxu0 0.0
        %1142 = vmatprep.subr.mxu0 0.0
        %1143 = vmatpush1.msra.mxu0 0.0
        %1144 = vmatprep.subr.mxu0 0.0
        %1145 = vmatpush1.msra.mxu0 0.0
        %1146 = vmatprep.subr.mxu0 0.0
        %1147 = vmatpush1.msra.mxu0 0.0
        %1148 = vmatprep.subr.mxu0 0.0
        %1149 = vmatpush1.msra.mxu0 0.0
        %1150 = vmatprep.subr.mxu0 0.0
        %1151 = vmatpush1.msra.mxu0 0.0
        %1152 = vmatprep.subr.mxu0 0.0
        %1153 = vmatpush1.msra.mxu0 0.0
        %1154 = vmatprep.subr.mxu0 0.0
        %1155 = vmatpush1.msra.mxu0 0.0
        %1156 = vmatprep.subr.mxu0 0.0
        %1157 = vmatpush1.msra.mxu0 0.0
        %1158 = vmatprep.subr.mxu0 0.0
        %1159 = vmatpush1.msra.mxu0 0.0
        %1160 = vmatprep.subr.mxu0 0.0
        %1161 = vmatpush1.msra.mxu0 0.0
        %1162 = vmatprep.subr.mxu0 0.0
        %1163 = vmatpush1.msra.mxu0 0.0
        %1164 = vmatprep.subr.mxu0 0.0
        %1165 = vmatpush1.msra.mxu0 0.0
        %1166 = vmatprep.subr.mxu0 0.0
        %1167 = vmatpush1.msra.mxu0 0.0
        %1168 = vmatprep.subr.mxu0 0.0
        %1169 = vmatpush1.msra.mxu0 0.0
        %1170 = vmatprep.subr.mxu0 0.0
        %1171 = vmatpush1.msra.mxu0 0.0
        %1172 = vmatprep.subr.mxu0 0.0
        %1173 = vmatpush1.msra.mxu0 0.0
        %1174 = vmatprep.mubr.f32.mxu0 0.0
        %1175 = vmatmul.mubr.f32.gmra.mrb[0].mxu0 %v1108
        %v1176 = vpop.f32.mrb[0].mxu0
        %v1177 = vadd.f32 %v1106, %v1176
        %v1178 = vpop.f32.mrb[0].mxu0
        %1179 = vdwg.mxu0
        %v1180 = vadd.f32 %v308, %v1177
        %v1181 = vsel %vm344, %v1180, 0.0
        %1182 = vadd.xlane.f32.xlu0 %v1181
        %v1183 = vpop.xlane.xlu0 %1182
        %v1184 = vrcp.pop 32.0
        %v1185 = vmul.f32 %v1183, %v1184
        %v1186 = vsub.f32 %v1180, %v1185
        %v1187 = vmul.f32 %v1186, %v1186
        %v1188 = vsel %vm344, %v1187, 0.0
        %1189 = vadd.xlane.f32.xlu0 %v1188
        %v1190 = vpop.xlane.xlu0 %1189
        %v1191 = vmul.f32 %v1190, %v1184
        %v1192 = vadd.f32 %v1191, 1e-05
        %v1193 = vrsqrt.pop %v1192
        %v1194 = vmul.f32 %v1186, %v1193
        %v1195 = vlaneseq
        %v1196 = vshrl.u32 %v1195, 7
        %v1197 = vsub.s32 0, %v1196
        %v1198 = vrot.slane %v334, %v1197
        %v1199 = vmul.f32 %v1194, %v1198
        %v1200 = vlaneseq
        %v1201 = vshrl.u32 %v1200, 7
        %v1202 = vsub.s32 0, %v1201
        %v1203 = vrot.slane %v335, %v1202
        %v1204 = vadd.f32 %v1199, %v1203
        %v1205 = vlaneseq
        %v1206 = vshrl.u32 %v1205, 7
        %v1207 = vsub.s32 0, %v1206
        %v1208 = vrot.slane %v336, %v1207
        %v1210 = vsel %vm344, %v1204, 0
        %1212 = vmatprep.subr.mxu0 0.0
        %1213 = vmatpush1.msra.mxu0 %v320
        %1214 = vmatprep.subr.mxu0 0.0
        %1215 = vmatpush1.msra.mxu0 %v321
        %1216 = vmatprep.subr.mxu0 0.0
        %1217 = vmatpush1.msra.mxu0 %v322
        %1218 = vmatprep.subr.mxu0 0.0
        %1219 = vmatpush1.msra.mxu0 %v323
        %1220 = vmatprep.subr.mxu0 0.0
        %1221 = vmatpush1.msra.mxu0 0.0
        %1222 = vmatprep.subr.mxu0 0.0
        %1223 = vmatpush1.msra.mxu0 0.0
        %1224 = vmatprep.subr.mxu0 0.0
        %1225 = vmatpush1.msra.mxu0 0.0
        %1226 = vmatprep.subr.mxu0 0.0
        %1227 = vmatpush1.msra.mxu0 0.0
        %1228 = vmatprep.subr.mxu0 0.0
        %1229 = vmatpush1.msra.mxu0 0.0
        %1230 = vmatprep.subr.mxu0 0.0
        %1231 = vmatpush1.msra.mxu0 0.0
        %1232 = vmatprep.subr.mxu0 0.0
        %1233 = vmatpush1.msra.mxu0 0.0
        %1234 = vmatprep.subr.mxu0 0.0
        %1235 = vmatpush1.msra.mxu0 0.0
        %1236 = vmatprep.subr.mxu0 0.0
        %1237 = vmatpush1.msra.mxu0 0.0
        %1238 = vmatprep.subr.mxu0 0.0
        %1239 = vmatpush1.msra.mxu0 0.0
        %1240 = vmatprep.subr.mxu0 0.0
        %1241 = vmatpush1.msra.mxu0 0.0
        %1242 = vmatprep.subr.mxu0 0.0
        %1243 = vmatpush1.msra.mxu0 0.0
        %1244 = vmatprep.subr.mxu0 0.0
        %1245 = vmatpush1.msra.mxu0 0.0
        %1246 = vmatprep.subr.mxu0 0.0
        %1247 = vmatpush1.msra.mxu0 0.0
        %1248 = vmatprep.subr.mxu0 0.0
        %1249 = vmatpush1.msra.mxu0 0.0
        %1250 = vmatprep.subr.mxu0 0.0
        %1251 = vmatpush1.msra.mxu0 0.0
        %1252 = vmatprep.subr.mxu0 0.0
        %1253 = vmatpush1.msra.mxu0 0.0
        %1254 = vmatprep.subr.mxu0 0.0
        %1255 = vmatpush1.msra.mxu0 0.0
        %1256 = vmatprep.subr.mxu0 0.0
        %1257 = vmatpush1.msra.mxu0 0.0
        %1258 = vmatprep.subr.mxu0 0.0
        %1259 = vmatpush1.msra.mxu0 0.0
        %1260 = vmatprep.subr.mxu0 0.0
        %1261 = vmatpush1.msra.mxu0 0.0
        %1262 = vmatprep.subr.mxu0 0.0
        %1263 = vmatpush1.msra.mxu0 0.0
        %1264 = vmatprep.subr.mxu0 0.0
        %1265 = vmatpush1.msra.mxu0 0.0
        %1266 = vmatprep.subr.mxu0 0.0
        %1267 = vmatpush1.msra.mxu0 0.0
        %1268 = vmatprep.subr.mxu0 0.0
        %1269 = vmatpush1.msra.mxu0 0.0
        %1270 = vmatprep.subr.mxu0 0.0
        %1271 = vmatpush1.msra.mxu0 0.0
        %1272 = vmatprep.subr.mxu0 0.0
        %1273 = vmatpush1.msra.mxu0 0.0
        %1274 = vmatprep.subr.mxu0 0.0
        %1275 = vmatpush1.msra.mxu0 0.0
        %1276 = vmatprep.mubr.f32.mxu0 0.0
        %1277 = vmatmul.mubr.f32.gmra.mrb[0].mxu0 %v1210
        %v1278 = vpop.f32.mrb[0].mxu0
        %v1279 = vadd.f32 %v1208, %v1278
        %v1280 = vpop.f32.mrb[0].mxu0
        %1281 = vdwg.mxu0
        %v1282 = vmax.f32 %v1279, 0.0
        %v1283 = vlaneseq
        %v1284 = vshrl.u32 %v1283, 7
        %v1285 = vsub.s32 0, %v1284
        %v1286 = vrot.slane %v337, %v1285
        %vm1287 = vcmask 523264
        %v1289 = vsel %vm1287, %v1282, 0
        %1291 = vmatprep.subr.mxu0 0.0
        %1292 = vmatpush1.msra.mxu0 %v324
        %1293 = vmatprep.subr.mxu0 0.0
        %1294 = vmatpush1.msra.mxu0 %v325
        %1295 = vmatprep.subr.mxu0 0.0
        %1296 = vmatpush1.msra.mxu0 %v326
        %1297 = vmatprep.subr.mxu0 0.0
        %1298 = vmatpush1.msra.mxu0 %v327
        %1299 = vmatprep.subr.mxu0 0.0
        %1300 = vmatpush1.msra.mxu0 %v328
        %1301 = vmatprep.subr.mxu0 0.0
        %1302 = vmatpush1.msra.mxu0 %v329
        %1303 = vmatprep.subr.mxu0 0.0
        %1304 = vmatpush1.msra.mxu0 %v330
        %1305 = vmatprep.subr.mxu0 0.0
        %1306 = vmatpush1.msra.mxu0 %v331
        %1307 = vmatprep.subr.mxu0 0.0
        %1308 = vmatpush1.msra.mxu0 0.0
        %1309 = vmatprep.subr.mxu0 0.0
        %1310 = vmatpush1.msra.mxu0 0.0
        %1311 = vmatprep.subr.mxu0 0.0
        %1312 = vmatpush1.msra.mxu0 0.0
        %1313 = vmatprep.subr.mxu0 0.0
        %1314 = vmatpush1.msra.mxu0 0.0
        %1315 = vmatprep.subr.mxu0 0.0
        %1316 = vmatpush1.msra.mxu0 0.0
        %1317 = vmatprep.subr.mxu0 0.0
        %1318 = vmatpush1.msra.mxu0 0.0
        %1319 = vmatprep.subr.mxu0 0.0
        %1320 = vmatpush1.msra.mxu0 0.0
        %1321 = vmatprep.subr.mxu0 0.0
        %1322 = vmatpush1.msra.mxu0 0.0
        %1323 = vmatprep.subr.mxu0 0.0
        %1324 = vmatpush1.msra.mxu0 0.0
        %1325 = vmatprep.subr.mxu0 0.0
        %1326 = vmatpush1.msra.mxu0 0.0
        %1327 = vmatprep.subr.mxu0 0.0
        %1328 = vmatpush1.msra.mxu0 0.0
        %1329 = vmatprep.subr.mxu0 0.0
        %1330 = vmatpush1.msra.mxu0 0.0
        %1331 = vmatprep.subr.mxu0 0.0
        %1332 = vmatpush1.msra.mxu0 0.0
        %1333 = vmatprep.subr.mxu0 0.0
        %1334 = vmatpush1.msra.mxu0 0.0
        %1335 = vmatprep.subr.mxu0 0.0
        %1336 = vmatpush1.msra.mxu0 0.0
        %1337 = vmatprep.subr.mxu0 0.0
        %1338 = vmatpush1.msra.mxu0 0.0
        %1339 = vmatprep.subr.mxu0 0.0
        %1340 = vmatpush1.msra.mxu0 0.0
        %1341 = vmatprep.subr.mxu0 0.0
        %1342 = vmatpush1.msra.mxu0 0.0
        %1343 = vmatprep.subr.mxu0 0.0
        %1344 = vmatpush1.msra.mxu0 0.0
        %1345 = vmatprep.subr.mxu0 0.0
        %1346 = vmatpush1.msra.mxu0 0.0
        %1347 = vmatprep.subr.mxu0 0.0
        %1348 = vmatpush1.msra.mxu0 0.0
        %1349 = vmatprep.subr.mxu0 0.0
        %1350 = vmatpush1.msra.mxu0 0.0
        %1351 = vmatprep.subr.mxu0 0.0
        %1352 = vmatpush1.msra.mxu0 0.0
        %1353 = vmatprep.subr.mxu0 0.0
        %1354 = vmatpush1.msra.mxu0 0.0
        %1355 = vmatprep.mubr.f32.mxu0 0.0
        %1356 = vmatmul.mubr.f32.gmra.mrb[0].mxu0 %v1289
        %v1357 = vpop.f32.mrb[0].mxu0
        %v1358 = vadd.f32 %v1286, %v1357
        %v1359 = vpop.f32.mrb[0].mxu0
        %1360 = vdwg.mxu0
        %v1361 = vadd.f32 %v1204, %v1358
        %v1362 = vsel %vm344, %v1361, 0.0
        %1363 = vadd.xlane.f32.xlu0 %v1362
        %v1364 = vpop.xlane.xlu0 %1363
        %v1365 = vmul.f32 %v1364, %v1184
        %v1366 = vsub.f32 %v1361, %v1365
        %v1367 = vmul.f32 %v1366, %v1366
        %v1368 = vsel %vm344, %v1367, 0.0
        %1369 = vadd.xlane.f32.xlu0 %v1368
        %v1370 = vpop.xlane.xlu0 %1369
        %v1371 = vmul.f32 %v1370, %v1184
        %v1372 = vadd.f32 %v1371, 1e-05
        %v1373 = vrsqrt.pop %v1372
        %v1374 = vmul.f32 %v1366, %v1373
        %v1375 = vlaneseq
        %v1376 = vshrl.u32 %v1375, 7
        %v1377 = vsub.s32 0, %v1376
        %v1378 = vrot.slane %v338, %v1377
        %v1379 = vmul.f32 %v1374, %v1378
        %v1380 = vlaneseq
        %v1381 = vshrl.u32 %v1380, 7
        %v1382 = vsub.s32 0, %v1381
        %v1383 = vrot.slane %v339, %v1382
        %v1384 = vadd.f32 %v1379, %v1383
        %1385 = vst.msk [vmem:[%s304] sm:$0xff] %vm344, %v1384
        %s1386 = sand.u32 %s189, 1
        %s1387 = scalar_lea.sflag [#allocation4], %s1386
        %s1388 = sand.u32 %s189, 1
        %s1389 = smul.addr %s1388, 8
        %s1390 = scalar_lea.vmem [#allocation5], %s1389
        // Predicated region
        $region53: #{encoder_forward.1} parent=47 // pred_check
          %p1391 = pneg %p199
        $region54: #{encoder_forward.1} parent=47 // pred_check_branch
          %1393 = sbr.rel (%p1391) target = $region56
        $region55: #{encoder_forward.1} parent=47 // pred_region
          %s1395 = ssub.s32 128, 128
          %1396 = vsyncadd %s1387, %s1395
          %s1397 = smul.addr %s24, 128
          %s1398 = scalar_lea.hbm %s7, %s1397
          %s1400 = sshll.u32 %s1390, 4
          %s1401 = int_to_ptr.vmem [resolvable:$true] %s1400
          %1403 = dma.vmem_to_hbm [thread:$0]  %s1401, 128, %s1398, %s1387
        $region56: #{encoder_forward.1} parent=47 // pred_fallthru
          _
      $region48: #{encoder_forward.1} parent=5 // pred_fallthru
        _
      %p1404 = scmp.le.s32.totalorder 2, %s19
      // Predicated region
      $region57: #{encoder_forward.1} parent=5 // pred_check
        %p1405 = pneg %p1404
      $region58: #{encoder_forward.1} parent=5 // pred_check_branch
        %1407 = sbr.rel (%p1405) target = $region60
      $region59: #{encoder_forward.1} parent=5 // pred_region
        %s1408 = ssub.s32 %s19, 2
        // Predicated region
        $region61: #{encoder_forward.1} parent=59 // pred_check
          %p1409 = pneg %p205
        $region62: #{encoder_forward.1} parent=59 // pred_check_branch
          %1411 = sbr.rel (%p1409) target = $region64
        $region63: #{encoder_forward.1} parent=59 // pred_region
          %s1412 = sand.u32 %s190, 1
          %s1413 = scalar_lea.sflag [#allocation4], %s1412
          %s1414 = sand.u32 %s190, 1
          %s1415 = smul.addr %s1414, 8
          %s1416 = scalar_lea.vmem [#allocation5], %s1415
          %1417 = dma.done %s1413, 128
        $region64: #{encoder_forward.1} parent=59 // pred_fallthru
          _
      $region60: #{encoder_forward.1} parent=5 // pred_fallthru
        _
    $region6: #{encoder_forward.1} parent=1 // loop_footer
      %s23 = sadd.s32 1, %s19
    $region7: #{encoder_forward.1} parent=1 // loop_footer_branch
      %18 = sbr.rel target = $region3
    $region8: #{encoder_forward.1} parent=1 // loop_exit
      _
    %1418 = vsyncpa [#allocation3], 1
    %s1419 = scalar_lea.sflag [#allocation3], 1
    %1420 = vsyncpa %s1419, 1
    %1421 = vsyncpa [#allocation4], 1
    %s1422 = scalar_lea.sflag [#allocation4], 1
    %1423 = vsyncpa %s1422, 1

</llo_original>
